<compile_context>
chip_gen: v7x
topology: tpu7x:2x2x1
jax: 0.10.0
libtpu: 0.0.40
codegen_flags: <defaults>
</compile_context>

<pallas_src>
import jax
import jax.numpy as jnp
from jax.experimental import pallas as pl
from jax.experimental.pallas import tpu as pltpu

# ---------------------------------------------------------------------------
# Model dimensions (2-layer LSTM, hidden 32, actor 32 -> 64 -> 32 -> 12, obs 48, batch 1).
# ---------------------------------------------------------------------------
NUM_LAYERS = 2
HIDDEN = 32
OBS = 48
ACTOR_HIDDEN = (64, 32)
NUM_ACTIONS = 12
BATCH = 1                       # hidden/cell register_buffers have batch dim 1

LANE = 128                      # vreg lane width; also equals 4 * HIDDEN
BP = 8                          # padded sublane rows (env/batch capacity per block)
assert 4 * HIDDEN == LANE
assert OBS <= LANE and BATCH <= BP
assert max(ACTOR_HIDDEN + (NUM_ACTIONS,)) <= LANE

# ---------------------------------------------------------------------------
# Packed parameter slab: ONE (SLAB_ROWS, 128) bf16 array, all row offsets multiples of 16
# (bf16 sublane tile), all blocks pre-transposed to (in, out) and lane-padded to 128.
# ---------------------------------------------------------------------------
ROW_W_IH0 = 0                     # (128, 128) W_ih layer0^T, rows 48:128 zero (obs padded)
ROW_W_HH0 = ROW_W_IH0 + LANE      # ( 32, 128) W_hh layer0^T
ROW_W_IH1 = ROW_W_HH0 + HIDDEN    # ( 32, 128) W_ih layer1^T
ROW_W_HH1 = ROW_W_IH1 + HIDDEN    # ( 32, 128) W_hh layer1^T
ROW_A0    = ROW_W_HH1 + HIDDEN    # ( 32, 128) actor fc0^T (32 -> 64, lane padded)
ROW_A1    = ROW_A0 + HIDDEN       # (128, 128) actor fc1^T (64 -> 32, zero padded K & N)
ROW_A2    = ROW_A1 + LANE         # (128, 128) actor fc2^T (32 -> 12, zero padded K & N)
ROW_BIAS  = ROW_A2 + LANE         # ( 16, 128) rows: b_lstm0, b_lstm1, ab0, ab1, ab2, 0...
SLAB_ROWS = ROW_BIAS + 16         # = 528
for _r in (ROW_W_IH0, ROW_W_HH0, ROW_W_IH1, ROW_W_HH1, ROW_A0, ROW_A1, ROW_A2, ROW_BIAS, SLAB_ROWS):
    assert _r % 16 == 0


# ---------------------------------------------------------------------------
# In-kernel math helpers
# ---------------------------------------------------------------------------
def _sigmoid_exact(x):
    # Exact 1/(1+exp(-x)): the recurrent state is fed back for many steps, so no approx recip.
    return 1.0 / (1.0 + jnp.exp(-x))


def _elu(x):
    # torch.nn.ELU(alpha=1.0); clamp before exp so large positives never produce inf.
    return jnp.where(x > 0, x, jnp.exp(jnp.minimum(x, 0.0)) - 1.0)


def _lstm_cell(x, h, c, w_ih_t, w_hh_t, b):
    """One PyTorch LSTM cell step.  Weights pre-transposed (in, 4H); gate order [i|f|g|o].
    The g-gate columns of the weights/bias were pre-scaled by 2 at pack time, so
    tanh(z) is recovered as 2*sigmoid(2z) - 1 -> only ONE transcendental pass over the gates."""
    gates = (jnp.dot(x, w_ih_t, preferred_element_type=jnp.float32)
             + jnp.dot(h, w_hh_t, preferred_element_type=jnp.float32)
             + b)
    sig = _sigmoid_exact(gates)                     # full 128-lane vreg, single EUP chain
    i = sig[:, 0 * HIDDEN:1 * HIDDEN]
    f = sig[:, 1 * HIDDEN:2 * HIDDEN]
    g = 2.0 * sig[:, 2 * HIDDEN:3 * HIDDEN] - 1.0   # tanh via pre-scaled gate
    o = sig[:, 3 * HIDDEN:4 * HIDDEN]
    c_new = f * c + i * g
    h_new = o * jnp.tanh(c_new)
    return h_new, c_new


# ---------------------------------------------------------------------------
# Kernel: grid=(T,), one control step per grid iteration.
# ---------------------------------------------------------------------------
def policy_lstm_kernel(state_ref, x_ref, p_ref, act_ref, state_out_ref, h_scr, c_scr):
    t = pl.program_id(0)

    def wblk(row, nrows):
        # bf16 slab block -> f32 (activations / accumulation stay f32).
        return p_ref[pl.ds(row, nrows), :].astype(jnp.float32)

    # --- one-time init: unpack the (8,128) packed h/c state into VMEM scratch -------------
    @pl.when(t == 0)
    def _init():
        st = state_ref[...]                                  # (BP, 128) f32
        h_scr[0] = st[:, 0 * HIDDEN:1 * HIDDEN]
        h_scr[1] = st[:, 1 * HIDDEN:2 * HIDDEN]
        c_scr[0] = st[:, 2 * HIDDEN:3 * HIDDEN]
        c_scr[1] = st[:, 3 * HIDDEN:4 * HIDDEN]

    bias = wblk(ROW_BIAS, 16)                                # (16, 128)
    b_l0, b_l1 = bias[0:1, :], bias[1:2, :]                  # fused b_ih + b_hh (g cols x2)
    ab0, ab1, ab2 = bias[2:3, :], bias[3:4, :], bias[4:5, :]

    x = x_ref[0]                                             # (BP, 128); lanes 48:128 are 0

    # --- 2-layer LSTM, single time step ----------------------------------------------------
    h0n, c0n = _lstm_cell(x, h_scr[0], c_scr[0],
                          wblk(ROW_W_IH0, LANE), wblk(ROW_W_HH0, HIDDEN), b_l0)
    h1n, c1n = _lstm_cell(h0n, h_scr[1], c_scr[1],
                          wblk(ROW_W_IH1, HIDDEN), wblk(ROW_W_HH1, HIDDEN), b_l1)

    h_scr[0] = h0n
    c_scr[0] = c0n
    h_scr[1] = h1n
    c_scr[1] = c1n

    # --- actor MLP: Linear -> ELU -> Linear -> ELU -> Linear (128-lane activations) --------
    y = _elu(jnp.dot(h1n, wblk(ROW_A0, HIDDEN), preferred_element_type=jnp.float32) + ab0)
    y = _elu(jnp.dot(y, wblk(ROW_A1, LANE), preferred_element_type=jnp.float32) + ab1)
    y = jnp.dot(y, wblk(ROW_A2, LANE), preferred_element_type=jnp.float32) + ab2

    act_ref[0] = y                                           # full unmasked (BP,128) store

    # --- write the recurrent state back only on the last step (aliased with state_ref) -----
    @pl.when(t == pl.num_programs(0) - 1)
    def _writeback():
        state_out_ref[:, 0 * HIDDEN:1 * HIDDEN] = h0n
        state_out_ref[:, 1 * HIDDEN:2 * HIDDEN] = h1n
        state_out_ref[:, 2 * HIDDEN:3 * HIDDEN] = c0n
        state_out_ref[:, 3 * HIDDEN:4 * HIDDEN] = c1n


# ---------------------------------------------------------------------------
# Wrapper: T control steps fused into one pallas_call.
# ---------------------------------------------------------------------------
@jax.jit
def policy_rollout(obs, h, c, param_slab):
    """obs: (T, B, OBS); h, c: (NUM_LAYERS, B, HIDDEN).  Returns (actions (T,B,A), h_new, c_new).
    The packed state input is aliased to the packed state output (register_buffer semantics)."""
    T, B, _ = obs.shape

    obs_p = jnp.zeros((T, BP, LANE), jnp.float32).at[:, :B, :OBS].set(obs)
    state = jnp.zeros((BP, LANE), jnp.float32)
    state = state.at[:B, 0 * HIDDEN:1 * HIDDEN].set(h[0])
    state = state.at[:B, 1 * HIDDEN:2 * HIDDEN].set(h[1])
    state = state.at[:B, 2 * HIDDEN:3 * HIDDEN].set(c[0])
    state = state.at[:B, 3 * HIDDEN:4 * HIDDEN].set(c[1])

    actions_p, state_new = pl.pallas_call(
        policy_lstm_kernel,
        out_shape=(
            jax.ShapeDtypeStruct((T, BP, LANE), jnp.float32),   # packed per-step actions
            jax.ShapeDtypeStruct((BP, LANE), jnp.float32),      # packed new (h, c)
        ),
        grid=(T,),
        in_specs=[
            pl.BlockSpec((BP, LANE), lambda t: (0, 0)),             # packed state (read @ t==0)
            pl.BlockSpec((1, BP, LANE), lambda t: (t, 0, 0)),       # per-step obs block
            pl.BlockSpec((SLAB_ROWS, LANE), lambda t: (0, 0)),      # bf16 slab, VMEM-resident
        ],
        out_specs=(
            pl.BlockSpec((1, BP, LANE), lambda t: (t, 0, 0)),       # per-step actions block
            pl.BlockSpec((BP, LANE), lambda t: (0, 0)),             # packed state out
        ),
        scratch_shapes=[
            pltpu.VMEM((NUM_LAYERS, BP, HIDDEN), jnp.float32),      # h across steps
            pltpu.VMEM((NUM_LAYERS, BP, HIDDEN), jnp.float32),      # c across steps
        ],
        input_output_aliases={0: 1},                                # state in -> state out
        compiler_params=pltpu.CompilerParams(
            dimension_semantics=("arbitrary",)),                    # steps are sequential
    )(state, obs_p, param_slab)

    actions = actions_p[:, :B, :NUM_ACTIONS]
    h_new = jnp.stack([state_new[:B, 0 * HIDDEN:1 * HIDDEN],
                       state_new[:B, 1 * HIDDEN:2 * HIDDEN]])
    c_new = jnp.stack([state_new[:B, 2 * HIDDEN:3 * HIDDEN],
                       state_new[:B, 3 * HIDDEN:4 * HIDDEN]])
    return actions, h_new, c_new


# ---------------------------------------------------------------------------
# Host-side parameter handling (done once, outside the per-step path)
# ---------------------------------------------------------------------------
def init_params(key):
    """PyTorch-layout parameters with PyTorch-like uniform init U(-1/sqrt(fan), 1/sqrt(fan))."""
    def u(k, shape, bound):
        return jax.random.uniform(k, shape, jnp.float32, -bound, bound)

    lstm = []
    bound = HIDDEN ** -0.5
    in_dims = (OBS, HIDDEN)
    for l in range(NUM_LAYERS):
        key, k1, k2, k3, k4 = jax.random.split(key, 5)
        lstm.append((u(k1, (4 * HIDDEN, in_dims[l]), bound),   # W_ih (4H, in)
                     u(k2, (4 * HIDDEN, HIDDEN), bound),       # W_hh (4H, H)
                     u(k3, (4 * HIDDEN,), bound),              # b_ih
                     u(k4, (4 * HIDDEN,), bound)))             # b_hh

    actor = []
    dims = (HIDDEN,) + ACTOR_HIDDEN + (NUM_ACTIONS,)
    for i in range(len(dims) - 1):
        key, k1, k2 = jax.random.split(key, 3)
        bnd = dims[i] ** -0.5
        actor.append((u(k1, (dims[i + 1], dims[i]), bnd),      # W (out, in)
                      u(k2, (dims[i + 1],), bnd)))             # b (out,)
    return lstm, actor


def pack_params(lstm_params, actor_params):
    """Pre-transpose to (in, out), fold b_ih + b_hh, pre-scale the g-gate columns by 2
    (tanh -> sigmoid fold), zero-pad to 128 lanes, pack into one (SLAB_ROWS,128) bf16 slab."""
    slab = jnp.zeros((SLAB_ROWS, LANE), jnp.float32)

    def put(s, row, block):
        r, c = block.shape
        return s.at[row:row + r, :c].set(block.astype(jnp.float32))

    def scale_g(w_t):   # w_t: (..., 4H) pre-transposed; g gate occupies cols 2H:3H
        return w_t.at[:, 2 * HIDDEN:3 * HIDDEN].multiply(2.0)

    (wih0, whh0, bih0, bhh0), (wih1, whh1, bih1, bhh1) = lstm_params
    slab = put(slab, ROW_W_IH0, scale_g(wih0.T))          # (48,128); rows 48:128 stay zero
    slab = put(slab, ROW_W_HH0, scale_g(whh0.T))
    slab = put(slab, ROW_W_IH1, scale_g(wih1.T))
    slab = put(slab, ROW_W_HH1, scale_g(whh1.T))

    (aw0, ab0), (aw1, ab1), (aw2, ab2) = actor_params
    slab = put(slab, ROW_A0, aw0.T)                        # (32, 64)
    slab = put(slab, ROW_A1, aw1.T)                        # (64, 32), rows 64:128 stay zero
    slab = put(slab, ROW_A2, aw2.T)                        # (32, 12), rows 32:128 stay zero

    slab = put(slab, ROW_BIAS + 0, scale_g((bih0 + bhh0)[None, :]))
    slab = put(slab, ROW_BIAS + 1, scale_g((bih1 + bhh1)[None, :]))
    slab = put(slab, ROW_BIAS + 2, ab0[None, :])
    slab = put(slab, ROW_BIAS + 3, ab1[None, :])
    slab = put(slab, ROW_BIAS + 4, ab2[None, :])
    return slab.astype(jnp.bfloat16)


# ---------------------------------------------------------------------------
# Pure-JAX reference replicating the PyTorch module across T control steps
# ---------------------------------------------------------------------------
def reference_rollout(obs, h, c, lstm_params, actor_params):
    acts = []
    for t in range(obs.shape[0]):
        layer_in = obs[t]
        hs, cs = [], []
        for l, (wih, whh, bih, bhh) in enumerate(lstm_params):
            gates = layer_in @ wih.T + h[l] @ whh.T + bih + bhh
            i = jax.nn.sigmoid(gates[:, 0 * HIDDEN:1 * HIDDEN])
            f = jax.nn.sigmoid(gates[:, 1 * HIDDEN:2 * HIDDEN])
            g = jnp.tanh(gates[:, 2 * HIDDEN:3 * HIDDEN])
            o = jax.nn.sigmoid(gates[:, 3 * HIDDEN:4 * HIDDEN])
            cn = f * c[l] + i * g
            hn = o * jnp.tanh(cn)
            hs.append(hn)
            cs.append(cn)
            layer_in = hn
        h, c = jnp.stack(hs), jnp.stack(cs)
        y = layer_in
        for idx, (w, b) in enumerate(actor_params):
            y = y @ w.T + b
            if idx < len(actor_params) - 1:
                y = jnp.where(y > 0, y, jnp.exp(y) - 1.0)
        acts.append(y)
    return jnp.stack(acts), h, c


if __name__ == "__main__":
    key = jax.random.PRNGKey(0)
    key, kx1, kx2, kp = jax.random.split(key, 4)

    lstm_params, actor_params = init_params(kp)
    param_slab = pack_params(lstm_params, actor_params)   # packed once on the host

    T = 8                                                  # control steps fused per call
    obs1 = jax.random.normal(kx1, (T, BATCH, OBS), jnp.float32)
    obs2 = jax.random.normal(kx2, (T, BATCH, OBS), jnp.float32)
    # register_buffer equivalents: start at zero (reset_memory semantics)
    h0 = jnp.zeros((NUM_LAYERS, BATCH, HIDDEN), jnp.float32)
    c0 = jnp.zeros((NUM_LAYERS, BATCH, HIDDEN), jnp.float32)

    # rollout 1: 8 control steps in one pallas_call
    acts1, h1, c1 = policy_rollout(obs1, h0, c0, param_slab)
    jax.block_until_ready((acts1, h1, c1))

    # rollout 2: feed the recurrent state back (stateful register_buffer semantics)
    acts2, h2, c2 = policy_rollout(obs2, h1, c1, param_slab)
    jax.block_until_ready((acts2, h2, c2))

    # validate the full 16-step trajectory (checks multi-step drift of the recurrent state)
    ref_a, ref_h, ref_c = reference_rollout(jnp.concatenate([obs1, obs2], axis=0),
                                            h0, c0, lstm_params, actor_params)
    got_a = jnp.concatenate([acts1, acts2], axis=0)
    for got, want, name in ((got_a, ref_a, "actions"), (h2, ref_h, "hidden"), (c2, ref_c, "cell")):
        err = float(jnp.max(jnp.abs(got - want)))
        assert err < 5e-2, f"{name} mismatch: max abs err {err}"

    print("KERNEL_OK")
</pallas_src>

<mosaic_0001>
module attributes {stable_mosaic.version = 11 : i64} {
  func.func @policy_lstm_kernel(%arg0: i32, %arg1: memref<8x128xf32, #tpu.memory_space<vmem>>, %arg2: memref<1x8x128xf32, #tpu.memory_space<vmem>>, %arg3: memref<528x128xbf16, #tpu.memory_space<vmem>>, %arg4: memref<1x8x128xf32, #tpu.memory_space<vmem>>, %arg5: memref<8x128xf32, #tpu.memory_space<vmem>>, %arg6: memref<2x8x32xf32, #tpu.memory_space<vmem>>, %arg7: memref<2x8x32xf32, #tpu.memory_space<vmem>>) attributes {dimension_semantics = [#tpu.dimension_semantics<arbitrary>], iteration_bounds = array<i64: 8>, scalar_prefetch = 0 : i64, scratch_operands = 2 : i64, tpu.core_type = #tpu.core_type<tc>, window_params = [{pipeline_mode = #tpu.pipeline_mode<synchronous>, transform_indices = @transform_0, window_bounds = array<i64: 8, 128>}, {transform_indices = @transform_1, window_bounds = array<i64: 1, 8, 128>}, {pipeline_mode = #tpu.pipeline_mode<synchronous>, transform_indices = @transform_2, window_bounds = array<i64: 528, 128>}, {transform_indices = @transform_3, window_bounds = array<i64: 1, 8, 128>}, {pipeline_mode = #tpu.pipeline_mode<synchronous>, transform_indices = @transform_4, window_bounds = array<i64: 8, 128>}]} {
    %c0_i32 = arith.constant 0 : i32
    %0 = arith.cmpi eq, %arg0, %c0_i32 : i32
    %1 = arith.extui %0 : i1 to i32
    %c0_i32_0 = arith.constant 0 : i32
    %2 = arith.cmpi ne, %1, %c0_i32_0 : i32
    scf.if %2 {
      %c0_61 = arith.constant 0 : index
      %c0_62 = arith.constant 0 : index
      %127 = vector.load %arg1[%c0_61, %c0_62] : memref<8x128xf32, #tpu.memory_space<vmem>>, vector<8x128xf32>
      %128 = vector.extract_strided_slice %127 {offsets = [0, 0], sizes = [8, 32], strides = [1, 1]} : vector<8x128xf32> to vector<8x32xf32>
      %c0_63 = arith.constant 0 : index
      %c0_64 = arith.constant 0 : index
      %c0_65 = arith.constant 0 : index
      %129 = vector.load %arg6[%c0_63, %c0_64, %c0_65] : memref<2x8x32xf32, #tpu.memory_space<vmem>>, vector<1x8x32xf32>
      %130 = vector.shape_cast %129 : vector<1x8x32xf32> to vector<8x32xf32>
      %131 = vector.shape_cast %128 : vector<8x32xf32> to vector<1x8x32xf32>
      tpu.vector_store %arg6[%c0_63, %c0_64, %c0_65], %131 {strides = array<i32>} : memref<2x8x32xf32, #tpu.memory_space<vmem>>, vector<1x8x32xf32>,
      %132 = vector.extract_strided_slice %127 {offsets = [0, 32], sizes = [8, 32], strides = [1, 1]} : vector<8x128xf32> to vector<8x32xf32>
      %c1_66 = arith.constant 1 : index
      %c0_67 = arith.constant 0 : index
      %c0_68 = arith.constant 0 : index
      %133 = vector.load %arg6[%c1_66, %c0_67, %c0_68] : memref<2x8x32xf32, #tpu.memory_space<vmem>>, vector<1x8x32xf32>
      %134 = vector.shape_cast %133 : vector<1x8x32xf32> to vector<8x32xf32>
      %135 = vector.shape_cast %132 : vector<8x32xf32> to vector<1x8x32xf32>
      tpu.vector_store %arg6[%c1_66, %c0_67, %c0_68], %135 {strides = array<i32>} : memref<2x8x32xf32, #tpu.memory_space<vmem>>, vector<1x8x32xf32>,
      %136 = vector.extract_strided_slice %127 {offsets = [0, 64], sizes = [8, 32], strides = [1, 1]} : vector<8x128xf32> to vector<8x32xf32>
      %c0_69 = arith.constant 0 : index
      %c0_70 = arith.constant 0 : index
      %c0_71 = arith.constant 0 : index
      %137 = vector.load %arg7[%c0_69, %c0_70, %c0_71] : memref<2x8x32xf32, #tpu.memory_space<vmem>>, vector<1x8x32xf32>
      %138 = vector.shape_cast %137 : vector<1x8x32xf32> to vector<8x32xf32>
      %139 = vector.shape_cast %136 : vector<8x32xf32> to vector<1x8x32xf32>
      tpu.vector_store %arg7[%c0_69, %c0_70, %c0_71], %139 {strides = array<i32>} : memref<2x8x32xf32, #tpu.memory_space<vmem>>, vector<1x8x32xf32>,
      %140 = vector.extract_strided_slice %127 {offsets = [0, 96], sizes = [8, 32], strides = [1, 1]} : vector<8x128xf32> to vector<8x32xf32>
      %c1_72 = arith.constant 1 : index
      %c0_73 = arith.constant 0 : index
      %c0_74 = arith.constant 0 : index
      %141 = vector.load %arg7[%c1_72, %c0_73, %c0_74] : memref<2x8x32xf32, #tpu.memory_space<vmem>>, vector<1x8x32xf32>
      %142 = vector.shape_cast %141 : vector<1x8x32xf32> to vector<8x32xf32>
      %143 = vector.shape_cast %140 : vector<8x32xf32> to vector<1x8x32xf32>
      tpu.vector_store %arg7[%c1_72, %c0_73, %c0_74], %143 {strides = array<i32>} : memref<2x8x32xf32, #tpu.memory_space<vmem>>, vector<1x8x32xf32>,
    } else {
    }
    %c512 = arith.constant 512 : index
    %c0 = arith.constant 0 : index
    %3 = vector.load %arg3[%c512, %c0] : memref<528x128xbf16, #tpu.memory_space<vmem>>, vector<16x128xbf16>
    %4 = arith.extf %3 : vector<16x128xbf16> to vector<16x128xf32>
    %5 = vector.extract_strided_slice %4 {offsets = [0, 0], sizes = [1, 128], strides = [1, 1]} : vector<16x128xf32> to vector<1x128xf32>
    %6 = vector.extract_strided_slice %4 {offsets = [1, 0], sizes = [1, 128], strides = [1, 1]} : vector<16x128xf32> to vector<1x128xf32>
    %7 = vector.extract_strided_slice %4 {offsets = [2, 0], sizes = [1, 128], strides = [1, 1]} : vector<16x128xf32> to vector<1x128xf32>
    %8 = vector.extract_strided_slice %4 {offsets = [3, 0], sizes = [1, 128], strides = [1, 1]} : vector<16x128xf32> to vector<1x128xf32>
    %9 = vector.extract_strided_slice %4 {offsets = [4, 0], sizes = [1, 128], strides = [1, 1]} : vector<16x128xf32> to vector<1x128xf32>
    %c0_1 = arith.constant 0 : index
    %c0_2 = arith.constant 0 : index
    %c0_3 = arith.constant 0 : index
    %10 = vector.load %arg2[%c0_1, %c0_2, %c0_3] : memref<1x8x128xf32, #tpu.memory_space<vmem>>, vector<1x8x128xf32>
    %11 = vector.shape_cast %10 : vector<1x8x128xf32> to vector<8x128xf32>
    %c0_4 = arith.constant 0 : index
    %c0_5 = arith.constant 0 : index
    %c0_6 = arith.constant 0 : index
    %12 = vector.load %arg6[%c0_4, %c0_5, %c0_6] : memref<2x8x32xf32, #tpu.memory_space<vmem>>, vector<1x8x32xf32>
    %13 = vector.shape_cast %12 : vector<1x8x32xf32> to vector<8x32xf32>
    %c0_7 = arith.constant 0 : index
    %c0_8 = arith.constant 0 : index
    %c0_9 = arith.constant 0 : index
    %14 = vector.load %arg7[%c0_7, %c0_8, %c0_9] : memref<2x8x32xf32, #tpu.memory_space<vmem>>, vector<1x8x32xf32>
    %15 = vector.shape_cast %14 : vector<1x8x32xf32> to vector<8x32xf32>
    %c0_10 = arith.constant 0 : index
    %c0_11 = arith.constant 0 : index
    %16 = vector.load %arg3[%c0_10, %c0_11] : memref<528x128xbf16, #tpu.memory_space<vmem>>, vector<128x128xbf16>
    %17 = arith.extf %16 : vector<128x128xbf16> to vector<128x128xf32>
    %c128 = arith.constant 128 : index
    %c0_12 = arith.constant 0 : index
    %18 = vector.load %arg3[%c128, %c0_12] : memref<528x128xbf16, #tpu.memory_space<vmem>>, vector<32x128xbf16>
    %19 = arith.extf %18 : vector<32x128xbf16> to vector<32x128xf32>
    %cst = arith.constant dense<0.000000e+00> : vector<8x128xf32>
    %20 = tpu.matmul %11, %17, %cst {dimension_numbers = #tpu.dot_dimension_numbers<[1], [0], [0], [1], [0, 0, 1, 1], [], []>} : vector<8x128xf32>, vector<128x128xf32>, vector<8x128xf32> -> vector<8x128xf32>
    %cst_13 = arith.constant dense<0.000000e+00> : vector<8x128xf32>
    %21 = tpu.matmul %13, %19, %cst_13 {dimension_numbers = #tpu.dot_dimension_numbers<[1], [0], [0], [1], [0, 0, 1, 1], [], []>} : vector<8x32xf32>, vector<32x128xf32>, vector<8x128xf32> -> vector<8x128xf32>
    %22 = arith.addf %20, %21 : vector<8x128xf32>
    %23 = vector.broadcast %5 : vector<1x128xf32> to vector<8x128xf32>
    %24 = arith.addf %22, %23 : vector<8x128xf32>
    %cst_14 = arith.constant 0.000000e+00 : f32
    %25 = vector.broadcast %cst_14 : f32 to vector<8x128xf32>
    %26 = arith.subf %25, %24 : vector<8x128xf32>
    %27 = math.exp %26 : vector<8x128xf32>
    %cst_15 = arith.constant 1.000000e+00 : f32
    %28 = vector.broadcast %cst_15 : f32 to vector<8x128xf32>
    %29 = arith.addf %28, %27 : vector<8x128xf32>
    %cst_16 = arith.constant 1.000000e+00 : f32
    %30 = vector.broadcast %cst_16 : f32 to vector<8x128xf32>
    %31 = arith.divf %30, %29 : vector<8x128xf32>
    %32 = vector.extract_strided_slice %31 {offsets = [0, 0], sizes = [8, 32], strides = [1, 1]} : vector<8x128xf32> to vector<8x32xf32>
    %33 = vector.extract_strided_slice %31 {offsets = [0, 32], sizes = [8, 32], strides = [1, 1]} : vector<8x128xf32> to vector<8x32xf32>
    %34 = vector.extract_strided_slice %31 {offsets = [0, 64], sizes = [8, 32], strides = [1, 1]} : vector<8x128xf32> to vector<8x32xf32>
    %cst_17 = arith.constant 2.000000e+00 : f32
    %35 = vector.broadcast %cst_17 : f32 to vector<8x32xf32>
    %36 = arith.mulf %35, %34 : vector<8x32xf32>
    %cst_18 = arith.constant 1.000000e+00 : f32
    %37 = vector.broadcast %cst_18 : f32 to vector<8x32xf32>
    %38 = arith.subf %36, %37 : vector<8x32xf32>
    %39 = vector.extract_strided_slice %31 {offsets = [0, 96], sizes = [8, 32], strides = [1, 1]} : vector<8x128xf32> to vector<8x32xf32>
    %40 = arith.mulf %33, %15 : vector<8x32xf32>
    %41 = arith.mulf %32, %38 : vector<8x32xf32>
    %42 = arith.addf %40, %41 : vector<8x32xf32>
    %43 = math.tanh %42 : vector<8x32xf32>
    %44 = arith.mulf %39, %43 : vector<8x32xf32>
    %c1 = arith.constant 1 : index
    %c0_19 = arith.constant 0 : index
    %c0_20 = arith.constant 0 : index
    %45 = vector.load %arg6[%c1, %c0_19, %c0_20] : memref<2x8x32xf32, #tpu.memory_space<vmem>>, vector<1x8x32xf32>
    %46 = vector.shape_cast %45 : vector<1x8x32xf32> to vector<8x32xf32>
    %c1_21 = arith.constant 1 : index
    %c0_22 = arith.constant 0 : index
    %c0_23 = arith.constant 0 : index
    %47 = vector.load %arg7[%c1_21, %c0_22, %c0_23] : memref<2x8x32xf32, #tpu.memory_space<vmem>>, vector<1x8x32xf32>
    %48 = vector.shape_cast %47 : vector<1x8x32xf32> to vector<8x32xf32>
    %c160 = arith.constant 160 : index
    %c0_24 = arith.constant 0 : index
    %49 = vector.load %arg3[%c160, %c0_24] : memref<528x128xbf16, #tpu.memory_space<vmem>>, vector<32x128xbf16>
    %50 = arith.extf %49 : vector<32x128xbf16> to vector<32x128xf32>
    %c192 = arith.constant 192 : index
    %c0_25 = arith.constant 0 : index
    %51 = vector.load %arg3[%c192, %c0_25] : memref<528x128xbf16, #tpu.memory_space<vmem>>, vector<32x128xbf16>
    %52 = arith.extf %51 : vector<32x128xbf16> to vector<32x128xf32>
    %cst_26 = arith.constant dense<0.000000e+00> : vector<8x128xf32>
    %53 = tpu.matmul %44, %50, %cst_26 {dimension_numbers = #tpu.dot_dimension_numbers<[1], [0], [0], [1], [0, 0, 1, 1], [], []>} : vector<8x32xf32>, vector<32x128xf32>, vector<8x128xf32> -> vector<8x128xf32>
    %cst_27 = arith.constant dense<0.000000e+00> : vector<8x128xf32>
    %54 = tpu.matmul %46, %52, %cst_27 {dimension_numbers = #tpu.dot_dimension_numbers<[1], [0], [0], [1], [0, 0, 1, 1], [], []>} : vector<8x32xf32>, vector<32x128xf32>, vector<8x128xf32> -> vector<8x128xf32>
    %55 = arith.addf %53, %54 : vector<8x128xf32>
    %56 = vector.broadcast %6 : vector<1x128xf32> to vector<8x128xf32>
    %57 = arith.addf %55, %56 : vector<8x128xf32>
    %cst_28 = arith.constant 0.000000e+00 : f32
    %58 = vector.broadcast %cst_28 : f32 to vector<8x128xf32>
    %59 = arith.subf %58, %57 : vector<8x128xf32>
    %60 = math.exp %59 : vector<8x128xf32>
    %cst_29 = arith.constant 1.000000e+00 : f32
    %61 = vector.broadcast %cst_29 : f32 to vector<8x128xf32>
    %62 = arith.addf %61, %60 : vector<8x128xf32>
    %cst_30 = arith.constant 1.000000e+00 : f32
    %63 = vector.broadcast %cst_30 : f32 to vector<8x128xf32>
    %64 = arith.divf %63, %62 : vector<8x128xf32>
    %65 = vector.extract_strided_slice %64 {offsets = [0, 0], sizes = [8, 32], strides = [1, 1]} : vector<8x128xf32> to vector<8x32xf32>
    %66 = vector.extract_strided_slice %64 {offsets = [0, 32], sizes = [8, 32], strides = [1, 1]} : vector<8x128xf32> to vector<8x32xf32>
    %67 = vector.extract_strided_slice %64 {offsets = [0, 64], sizes = [8, 32], strides = [1, 1]} : vector<8x128xf32> to vector<8x32xf32>
    %cst_31 = arith.constant 2.000000e+00 : f32
    %68 = vector.broadcast %cst_31 : f32 to vector<8x32xf32>
    %69 = arith.mulf %68, %67 : vector<8x32xf32>
    %cst_32 = arith.constant 1.000000e+00 : f32
    %70 = vector.broadcast %cst_32 : f32 to vector<8x32xf32>
    %71 = arith.subf %69, %70 : vector<8x32xf32>
    %72 = vector.extract_strided_slice %64 {offsets = [0, 96], sizes = [8, 32], strides = [1, 1]} : vector<8x128xf32> to vector<8x32xf32>
    %73 = arith.mulf %66, %48 : vector<8x32xf32>
    %74 = arith.mulf %65, %71 : vector<8x32xf32>
    %75 = arith.addf %73, %74 : vector<8x32xf32>
    %76 = math.tanh %75 : vector<8x32xf32>
    %77 = arith.mulf %72, %76 : vector<8x32xf32>
    %c0_33 = arith.constant 0 : index
    %c0_34 = arith.constant 0 : index
    %c0_35 = arith.constant 0 : index
    %78 = vector.load %arg6[%c0_33, %c0_34, %c0_35] : memref<2x8x32xf32, #tpu.memory_space<vmem>>, vector<1x8x32xf32>
    %79 = vector.shape_cast %78 : vector<1x8x32xf32> to vector<8x32xf32>
    %80 = vector.shape_cast %44 : vector<8x32xf32> to vector<1x8x32xf32>
    tpu.vector_store %arg6[%c0_33, %c0_34, %c0_35], %80 {strides = array<i32>} : memref<2x8x32xf32, #tpu.memory_space<vmem>>, vector<1x8x32xf32>,
    %c0_36 = arith.constant 0 : index
    %c0_37 = arith.constant 0 : index
    %c0_38 = arith.constant 0 : index
    %81 = vector.load %arg7[%c0_36, %c0_37, %c0_38] : memref<2x8x32xf32, #tpu.memory_space<vmem>>, vector<1x8x32xf32>
    %82 = vector.shape_cast %81 : vector<1x8x32xf32> to vector<8x32xf32>
    %83 = vector.shape_cast %42 : vector<8x32xf32> to vector<1x8x32xf32>
    tpu.vector_store %arg7[%c0_36, %c0_37, %c0_38], %83 {strides = array<i32>} : memref<2x8x32xf32, #tpu.memory_space<vmem>>, vector<1x8x32xf32>,
    %c1_39 = arith.constant 1 : index
    %c0_40 = arith.constant 0 : index
    %c0_41 = arith.constant 0 : index
    %84 = vector.load %arg6[%c1_39, %c0_40, %c0_41] : memref<2x8x32xf32, #tpu.memory_space<vmem>>, vector<1x8x32xf32>
    %85 = vector.shape_cast %84 : vector<1x8x32xf32> to vector<8x32xf32>
    %86 = vector.shape_cast %77 : vector<8x32xf32> to vector<1x8x32xf32>
    tpu.vector_store %arg6[%c1_39, %c0_40, %c0_41], %86 {strides = array<i32>} : memref<2x8x32xf32, #tpu.memory_space<vmem>>, vector<1x8x32xf32>,
    %c1_42 = arith.constant 1 : index
    %c0_43 = arith.constant 0 : index
    %c0_44 = arith.constant 0 : index
    %87 = vector.load %arg7[%c1_42, %c0_43, %c0_44] : memref<2x8x32xf32, #tpu.memory_space<vmem>>, vector<1x8x32xf32>
    %88 = vector.shape_cast %87 : vector<1x8x32xf32> to vector<8x32xf32>
    %89 = vector.shape_cast %75 : vector<8x32xf32> to vector<1x8x32xf32>
    tpu.vector_store %arg7[%c1_42, %c0_43, %c0_44], %89 {strides = array<i32>} : memref<2x8x32xf32, #tpu.memory_space<vmem>>, vector<1x8x32xf32>,
    %c224 = arith.constant 224 : index
    %c0_45 = arith.constant 0 : index
    %90 = vector.load %arg3[%c224, %c0_45] : memref<528x128xbf16, #tpu.memory_space<vmem>>, vector<32x128xbf16>
    %91 = arith.extf %90 : vector<32x128xbf16> to vector<32x128xf32>
    %cst_46 = arith.constant dense<0.000000e+00> : vector<8x128xf32>
    %92 = tpu.matmul %77, %91, %cst_46 {dimension_numbers = #tpu.dot_dimension_numbers<[1], [0], [0], [1], [0, 0, 1, 1], [], []>} : vector<8x32xf32>, vector<32x128xf32>, vector<8x128xf32> -> vector<8x128xf32>
    %93 = vector.broadcast %7 : vector<1x128xf32> to vector<8x128xf32>
    %94 = arith.addf %92, %93 : vector<8x128xf32>
    %cst_47 = arith.constant 0.000000e+00 : f32
    %95 = vector.broadcast %cst_47 : f32 to vector<8x128xf32>
    %96 = arith.cmpf ogt, %94, %95 : vector<8x128xf32>
    %cst_48 = arith.constant 0.000000e+00 : f32
    %97 = vector.broadcast %cst_48 : f32 to vector<8x128xf32>
    %98 = arith.minimumf %94, %97 : vector<8x128xf32>
    %99 = math.exp %98 : vector<8x128xf32>
    %cst_49 = arith.constant 1.000000e+00 : f32
    %100 = vector.broadcast %cst_49 : f32 to vector<8x128xf32>
    %101 = arith.subf %99, %100 : vector<8x128xf32>
    %102 = arith.select %96, %94, %101 : vector<8x128xi1>, vector<8x128xf32>
    %c256 = arith.constant 256 : index
    %c0_50 = arith.constant 0 : index
    %103 = vector.load %arg3[%c256, %c0_50] : memref<528x128xbf16, #tpu.memory_space<vmem>>, vector<128x128xbf16>
    %104 = arith.extf %103 : vector<128x128xbf16> to vector<128x128xf32>
    %cst_51 = arith.constant dense<0.000000e+00> : vector<8x128xf32>
    %105 = tpu.matmul %102, %104, %cst_51 {dimension_numbers = #tpu.dot_dimension_numbers<[1], [0], [0], [1], [0, 0, 1, 1], [], []>} : vector<8x128xf32>, vector<128x128xf32>, vector<8x128xf32> -> vector<8x128xf32>
    %106 = vector.broadcast %8 : vector<1x128xf32> to vector<8x128xf32>
    %107 = arith.addf %105, %106 : vector<8x128xf32>
    %cst_52 = arith.constant 0.000000e+00 : f32
    %108 = vector.broadcast %cst_52 : f32 to vector<8x128xf32>
    %109 = arith.cmpf ogt, %107, %108 : vector<8x128xf32>
    %cst_53 = arith.constant 0.000000e+00 : f32
    %110 = vector.broadcast %cst_53 : f32 to vector<8x128xf32>
    %111 = arith.minimumf %107, %110 : vector<8x128xf32>
    %112 = math.exp %111 : vector<8x128xf32>
    %cst_54 = arith.constant 1.000000e+00 : f32
    %113 = vector.broadcast %cst_54 : f32 to vector<8x128xf32>
    %114 = arith.subf %112, %113 : vector<8x128xf32>
    %115 = arith.select %109, %107, %114 : vector<8x128xi1>, vector<8x128xf32>
    %c384 = arith.constant 384 : index
    %c0_55 = arith.constant 0 : index
    %116 = vector.load %arg3[%c384, %c0_55] : memref<528x128xbf16, #tpu.memory_space<vmem>>, vector<128x128xbf16>
    %117 = arith.extf %116 : vector<128x128xbf16> to vector<128x128xf32>
    %cst_56 = arith.constant dense<0.000000e+00> : vector<8x128xf32>
    %118 = tpu.matmul %115, %117, %cst_56 {dimension_numbers = #tpu.dot_dimension_numbers<[1], [0], [0], [1], [0, 0, 1, 1], [], []>} : vector<8x128xf32>, vector<128x128xf32>, vector<8x128xf32> -> vector<8x128xf32>
    %119 = vector.broadcast %9 : vector<1x128xf32> to vector<8x128xf32>
    %120 = arith.addf %118, %119 : vector<8x128xf32>
    %c0_57 = arith.constant 0 : index
    %c0_58 = arith.constant 0 : index
    %c0_59 = arith.constant 0 : index
    %121 = vector.load %arg4[%c0_57, %c0_58, %c0_59] : memref<1x8x128xf32, #tpu.memory_space<vmem>>, vector<1x8x128xf32>
    %122 = vector.shape_cast %121 : vector<1x8x128xf32> to vector<8x128xf32>
    %123 = vector.shape_cast %120 : vector<8x128xf32> to vector<1x8x128xf32>
    tpu.vector_store %arg4[%c0_57, %c0_58, %c0_59], %123 {strides = array<i32>} : memref<1x8x128xf32, #tpu.memory_space<vmem>>, vector<1x8x128xf32>,
    %c7_i32 = arith.constant 7 : i32
    %124 = arith.cmpi eq, %arg0, %c7_i32 : i32
    %125 = arith.extui %124 : i1 to i32
    %c0_i32_60 = arith.constant 0 : i32
    %126 = arith.cmpi ne, %125, %c0_i32_60 : i32
    scf.if %126 {
      %c0_61 = arith.constant 0 : index
      %c0_62 = arith.constant 0 : index
      %127 = vector.load %arg5[%c0_61, %c0_62] : memref<8x128xf32, #tpu.memory_space<vmem>>, vector<8x32xf32>
      tpu.vector_store %arg5[%c0_61, %c0_62], %44 {strides = array<i32>} : memref<8x128xf32, #tpu.memory_space<vmem>>, vector<8x32xf32>,
      %c0_63 = arith.constant 0 : index
      %c32 = arith.constant 32 : index
      %128 = vector.load %arg5[%c0_63, %c32] : memref<8x128xf32, #tpu.memory_space<vmem>>, vector<8x32xf32>
      tpu.vector_store %arg5[%c0_63, %c32], %77 {strides = array<i32>} : memref<8x128xf32, #tpu.memory_space<vmem>>, vector<8x32xf32>,
      %c0_64 = arith.constant 0 : index
      %c64 = arith.constant 64 : index
      %129 = vector.load %arg5[%c0_64, %c64] : memref<8x128xf32, #tpu.memory_space<vmem>>, vector<8x32xf32>
      tpu.vector_store %arg5[%c0_64, %c64], %42 {strides = array<i32>} : memref<8x128xf32, #tpu.memory_space<vmem>>, vector<8x32xf32>,
      %c0_65 = arith.constant 0 : index
      %c96 = arith.constant 96 : index
      %130 = vector.load %arg5[%c0_65, %c96] : memref<8x128xf32, #tpu.memory_space<vmem>>, vector<8x32xf32>
      tpu.vector_store %arg5[%c0_65, %c96], %75 {strides = array<i32>} : memref<8x128xf32, #tpu.memory_space<vmem>>, vector<8x32xf32>,
    } else {
    }
    return
  }
  func.func @transform_0(%arg0: i32) -> (i32, i32) {
    %c0_i32 = arith.constant 0 : i32
    %c0_i32_0 = arith.constant 0 : i32
    %c0_i32_1 = arith.constant 0 : i32
    return %c0_i32, %c0_i32_0 : i32, i32
  }
  func.func @transform_1(%arg0: i32) -> (i32, i32, i32) {
    %c0_i32 = arith.constant 0 : i32
    %c0_i32_0 = arith.constant 0 : i32
    %c0_i32_1 = arith.constant 0 : i32
    return %arg0, %c0_i32, %c0_i32_0 : i32, i32, i32
  }
  func.func @transform_2(%arg0: i32) -> (i32, i32) {
    %c0_i32 = arith.constant 0 : i32
    %c0_i32_0 = arith.constant 0 : i32
    %c0_i32_1 = arith.constant 0 : i32
    return %c0_i32, %c0_i32_0 : i32, i32
  }
  func.func @transform_3(%arg0: i32) -> (i32, i32, i32) {
    %c0_i32 = arith.constant 0 : i32
    %c0_i32_0 = arith.constant 0 : i32
    %c0_i32_1 = arith.constant 0 : i32
    return %arg0, %c0_i32, %c0_i32_0 : i32, i32, i32
  }
  func.func @transform_4(%arg0: i32) -> (i32, i32) {
    %c0_i32 = arith.constant 0 : i32
    %c0_i32_0 = arith.constant 0 : i32
    %c0_i32_1 = arith.constant 0 : i32
    return %c0_i32, %c0_i32_0 : i32, i32
  }
}

</mosaic_0001>

<llo_original>
// kernel: policy_rollout.1
$region0: #{policy_rollout.1}
  #allocation0 [shape = 'u32[]', space=smem, size = 0x4, offset = 0x4, fixed_abs, tag = 'smem constant byte address 0x4 - core index']
  #allocation1 [shape = 'u32[144,128]{1,0:T(1,128)}', space=vmem, size = 0x12000, scoped, tag = 'internal scratch']
  #allocation2 [shape = 'f32[2,8,32]{2,1,0:T(8,128)}', space=vmem, size = 0x2000, scoped, tag = 'scratch operand']
  #allocation3 [shape = 'f32[2,8,32]{2,1,0:T(8,128)}', space=vmem, size = 0x2000, scoped, tag = 'scratch operand']
  %s0 = inlined_call_operand.vmem [shape: f32[8,128], index: 0, kind: input, shape index: {}, may-alias: {0,4}]
  %s1 = inlined_call_operand.vmem [shape: f32[8,8,128], index: 1, kind: input, shape index: {}]
  %s2 = inlined_call_operand.hbm [shape: bf16[528,128], index: 2, kind: input, shape index: {}]
  %s3 = inlined_call_operand.vmem [shape: f32[8,8,128], index: 3, kind: output, shape index: {0}]
  %s4 = inlined_call_operand.vmem [shape: f32[8,128], index: 4, kind: output, shape index: {1}, may-alias: {0,4}]
  %5 = xla_tuple %s3, %s4
  %s6 = sld [smem:[#allocation0]]
  $region65: #{policy_rollout.1} parent=0
    _
  %s8 = ssub.s32 1, %s6
  %s9 = scalar_select 0, %s8, %s6
  $region1: #{policy_rollout.1} parent=0
    #allocation4 [shape = 'u8[135168]{0}', space=vmem, size = 0x21000, scoped, tag = 'input window, operand 2, single buffered']
    #allocation5 [shape = 's32[2]{0}', space=sflag, size = 0x8, scoped, tag = 'scoped memory for policy_rollout.1']
    %10 = vsyncpa [#allocation5], 0
    loop: start=0, step=1, limit=10
    $region2: #{policy_rollout.1} parent=1 // loop_pre_header
      _
    $region3: #{policy_rollout.1} parent=1 // loop_header
      %s12 = sphi 0, %s16
      %p13 = scmp.ge.s32.totalorder %s12, 10
      %s20 = sphi 0, %s20
      %s22 = sphi 0, %s20
      %s23 = sphi 0, %s22
      %s37 = sphi 0, %s23
      %s43 = sphi 0, %s45
      %s46 = sphi 0, %s43
      %s47 = sphi 0, %s46
      %s63 = sphi 0, %s47
      %s67 = sphi 0, %s67
      %s69 = sphi 0, %s67
      %s70 = sphi 0, %s69
      %s84 = sphi 0, %s70
      %s90 = sphi 0, %s92
      %s93 = sphi 0, %s90
      %s94 = sphi 0, %s93
      %s110 = sphi 0, %s94
      %s114 = sphi 0, %s114
      %s116 = sphi 0, %s114
      %s117 = sphi 0, %s116
      %s131 = sphi 0, %s117
    $region4: #{policy_rollout.1} parent=1 // loop_header_branch
      %15 = sbr.rel (%p13) target = $region8
    $region5: #{policy_rollout.1} parent=1 // loop_body
      %s17 = ssub.s32 %s12, 1
      %s18 = ssub.s32 %s12, 2
      %s19 = sadd.s32 %s12, 1
      %s21 = sadd.s32 %s20, 1
      %p24 = scmp.eq.s32.totalorder %s12, 7
      %p25 = scmp.ne.s32.totalorder %s20, %s22
      %p26 = scmp.eq.s32.totalorder %s12, 0
      %p27 = por %p25, %p26
      %p28 = scmp.ne.s32.totalorder %s20, %s22
      %p29 = scmp.eq.s32.totalorder %s17, 7
      %p30 = por %p28, %p29
      %p31 = scmp.ne.s32.totalorder %s22, %s23
      %p32 = scmp.eq.s32.totalorder %s17, 0
      %p33 = por %p31, %p32
      %p34 = scmp.ne.s32.totalorder %s22, %s23
      %p35 = scmp.eq.s32.totalorder %s18, 7
      %p36 = por %p34, %p35
      %p38 = scmp.ne.s32.totalorder %s23, %s37
      %p39 = scmp.eq.s32.totalorder %s18, 0
      %p40 = por %p38, %p39
      %s41 = ssub.s32 %s12, %s19
      %p42 = scmp.eq.s32.totalorder %s41, 0
      %s44 = sadd.s32 %s43, 1
      %s45 = scalar_select %p42, %s43, %s44
      %p48 = pneg %p42
      %p49 = scmp.eq.s32.totalorder %s12, 7
      %p50 = por %p48, %p49
      %p51 = scmp.ne.s32.totalorder %s43, %s46
      %p52 = scmp.eq.s32.totalorder %s12, 0
      %p53 = por %p51, %p52
      %p54 = scmp.ne.s32.totalorder %s43, %s46
      %p55 = scmp.eq.s32.totalorder %s17, 7
      %p56 = por %p54, %p55
      %p57 = scmp.ne.s32.totalorder %s46, %s47
      %p58 = scmp.eq.s32.totalorder %s17, 0
      %p59 = por %p57, %p58
      %p60 = scmp.ne.s32.totalorder %s46, %s47
      %p61 = scmp.eq.s32.totalorder %s18, 7
      %p62 = por %p60, %p61
      %p64 = scmp.ne.s32.totalorder %s47, %s63
      %p65 = scmp.eq.s32.totalorder %s18, 0
      %p66 = por %p64, %p65
      %s68 = sadd.s32 %s67, 1
      %p71 = scmp.eq.s32.totalorder %s12, 7
      %p72 = scmp.ne.s32.totalorder %s67, %s69
      %p73 = scmp.eq.s32.totalorder %s12, 0
      %p74 = por %p72, %p73
      %p75 = scmp.ne.s32.totalorder %s67, %s69
      %p76 = scmp.eq.s32.totalorder %s17, 7
      %p77 = por %p75, %p76
      %p78 = scmp.ne.s32.totalorder %s69, %s70
      %p79 = scmp.eq.s32.totalorder %s17, 0
      %p80 = por %p78, %p79
      %p81 = scmp.ne.s32.totalorder %s69, %s70
      %p82 = scmp.eq.s32.totalorder %s18, 7
      %p83 = por %p81, %p82
      %p85 = scmp.ne.s32.totalorder %s70, %s84
      %p86 = scmp.eq.s32.totalorder %s18, 0
      %p87 = por %p85, %p86
      %s88 = ssub.s32 %s12, %s19
      %p89 = scmp.eq.s32.totalorder %s88, 0
      %s91 = sadd.s32 %s90, 1
      %s92 = scalar_select %p89, %s90, %s91
      %p95 = pneg %p89
      %p96 = scmp.eq.s32.totalorder %s12, 7
      %p97 = por %p95, %p96
      %p98 = scmp.ne.s32.totalorder %s90, %s93
      %p99 = scmp.eq.s32.totalorder %s12, 0
      %p100 = por %p98, %p99
      %p101 = scmp.ne.s32.totalorder %s90, %s93
      %p102 = scmp.eq.s32.totalorder %s17, 7
      %p103 = por %p101, %p102
      %p104 = scmp.ne.s32.totalorder %s93, %s94
      %p105 = scmp.eq.s32.totalorder %s17, 0
      %p106 = por %p104, %p105
      %p107 = scmp.ne.s32.totalorder %s93, %s94
      %p108 = scmp.eq.s32.totalorder %s18, 7
      %p109 = por %p107, %p108
      %p111 = scmp.ne.s32.totalorder %s94, %s110
      %p112 = scmp.eq.s32.totalorder %s18, 0
      %p113 = por %p111, %p112
      %s115 = sadd.s32 %s114, 1
      %p118 = scmp.eq.s32.totalorder %s12, 7
      %p119 = scmp.ne.s32.totalorder %s114, %s116
      %p120 = scmp.eq.s32.totalorder %s12, 0
      %p121 = por %p119, %p120
      %p122 = scmp.ne.s32.totalorder %s114, %s116
      %p123 = scmp.eq.s32.totalorder %s17, 7
      %p124 = por %p122, %p123
      %p125 = scmp.ne.s32.totalorder %s116, %s117
      %p126 = scmp.eq.s32.totalorder %s17, 0
      %p127 = por %p125, %p126
      %p128 = scmp.ne.s32.totalorder %s116, %s117
      %p129 = scmp.eq.s32.totalorder %s18, 7
      %p130 = por %p128, %p129
      %p132 = scmp.ne.s32.totalorder %s117, %s131
      %p133 = scmp.eq.s32.totalorder %s18, 0
      %p134 = por %p132, %p133
      %p135 = scmp.le.s32.totalorder 1, %s12
      %p136 = scmp.lt.s32.totalorder %s12, 9
      %p137 = pnand %p135, %p136
      %p138 = pneg %p137
      // Predicated region
      $region9: #{policy_rollout.1} parent=5 // pred_check
        _
      $region10: #{policy_rollout.1} parent=5 // pred_check_branch
        %140 = sbr.rel (%p137) target = $region12
      $region11: #{policy_rollout.1} parent=5 // pred_region
        %s141 = ssub.s32 %s12, 1
        // Predicated region
        $region13: #{policy_rollout.1} parent=11 // pred_check
          %p142 = pneg %p33
        $region14: #{policy_rollout.1} parent=11 // pred_check_branch
          %144 = sbr.rel (%p142) target = $region16
        $region15: #{policy_rollout.1} parent=11 // pred_region
          _
        $region16: #{policy_rollout.1} parent=11 // pred_fallthru
          _
        // Predicated region
        $region17: #{policy_rollout.1} parent=11 // pred_check
          %p145 = pneg %p80
        $region18: #{policy_rollout.1} parent=11 // pred_check_branch
          %147 = sbr.rel (%p145) target = $region20
        $region19: #{policy_rollout.1} parent=11 // pred_region
          %s149 = ssub.s32 4224, 4224
          %150 = vsyncadd [#allocation5], %s149
          %s151 = sshll.u32 [#allocation4], 4
          %s152 = int_to_ptr.vmem [resolvable:$true] %s151
          %157 = dma.hbm_to_vmem [thread:$0]  %s2, 4224, %s152, [#allocation5], 64, 64, 4
        $region20: #{policy_rollout.1} parent=11 // pred_fallthru
          _
      $region12: #{policy_rollout.1} parent=5 // pred_fallthru
        _
      %p158 = scmp.lt.s32.totalorder %s12, 8
      // Predicated region
      $region21: #{policy_rollout.1} parent=5 // pred_check
        %p159 = pneg %p158
      $region22: #{policy_rollout.1} parent=5 // pred_check_branch
        %161 = sbr.rel (%p159) target = $region24
      $region23: #{policy_rollout.1} parent=5 // pred_region
        // Predicated region
        $region25: #{policy_rollout.1} parent=23 // pred_check
          %p162 = pneg %p53
        $region26: #{policy_rollout.1} parent=23 // pred_check_branch
          %164 = sbr.rel (%p162) target = $region28
        $region27: #{policy_rollout.1} parent=23 // pred_region
          %p165 = scmp.lt.s32.totalorder %s12, 7
          %s166 = scalar_select %p165, %s12, 7
          %s167 = smul.addr %s166, 8
          %s168 = scalar_lea.vmem %s1, %s167
        $region28: #{policy_rollout.1} parent=23 // pred_fallthru
          _
      $region24: #{policy_rollout.1} parent=5 // pred_fallthru
        _
      %p169 = scmp.le.s32.totalorder 1, %s12
      %p170 = scmp.lt.s32.totalorder %s12, 9
      %p171 = pnand %p169, %p170
      %p172 = pneg %p171
      // Predicated region
      $region29: #{policy_rollout.1} parent=5 // pred_check
        _
      $region30: #{policy_rollout.1} parent=5 // pred_check_branch
        %174 = sbr.rel (%p171) target = $region32
      $region31: #{policy_rollout.1} parent=5 // pred_region
        %s175 = ssub.s32 %s12, 1
        // Predicated region
        $region33: #{policy_rollout.1} parent=31 // pred_check
          %p176 = pneg %p80
        $region34: #{policy_rollout.1} parent=31 // pred_check_branch
          %178 = sbr.rel (%p176) target = $region36
        $region35: #{policy_rollout.1} parent=31 // pred_region
          %179 = dma.done [#allocation5], 4224
        $region36: #{policy_rollout.1} parent=31 // pred_fallthru
          _
        %p180 = pneg %p33
        %p181 = pneg %p30
        %p182 = scmp.lt.s32.totalorder %s17, 7
        %s183 = scalar_select %p182, %s17, 7
        %s184 = smul.addr %s183, 8
        %s185 = scalar_lea.vmem %s1, %s184
        %p186 = pneg %p59
        %p187 = pneg %p56
        %p188 = pneg %p80
        %p189 = pneg %p77
        %p190 = pneg %p106
        %p191 = pneg %p103
        %p192 = scmp.lt.s32.totalorder %s17, 7
        %s193 = scalar_select %p192, %s17, 7
        %s194 = smul.addr %s193, 8
        %s195 = scalar_lea.vmem %s3, %s194
        %p196 = pneg %p127
        %p197 = pneg %p124
        %p198 = scmp.lt.s32.totalorder %s17, 7
        %s199 = scalar_select %p198, %s17, 7
        %s200 = smul.addr %s199, 8
        %s201 = scalar_lea.vmem %s1, %s200
        %p202 = scmp.lt.s32.totalorder %s17, 7
        %s203 = scalar_select %p202, %s17, 7
        %s204 = smul.addr %s203, 8
        %s205 = scalar_lea.vmem %s3, %s204
        %p206 = scmp.eq.s32.totalorder %s17, 0
        // Predicated region
        $region37: #{policy_rollout.1} parent=31 // pred_check
          %p207 = pneg %p206
        $region38: #{policy_rollout.1} parent=31 // pred_check_branch
          %209 = sbr.rel (%p207) target = $region40
        $region39: #{policy_rollout.1} parent=31 // pred_region
          %v210 = vld [vmem:[%s0] sm:$0xff]
          %vm211 = vcmask 261120
          %212 = vst.msk [vmem:[#allocation2] sm:$0xff] %vm211, %v210
          %214 = vrot.lane.b32.xlu0 %v210, 96
          %v215 = vpop.permute.xlu0 %214
          %s217 = scalar_lea.vmem [#allocation2], 8
          %218 = vst.msk [vmem:[%s217] sm:$0xff] %vm211, %v215
          %219 = vrot.lane.b32.xlu0 %v210, 64
          %v220 = vpop.permute.xlu0 %219
          %222 = vst.msk [vmem:[#allocation3] sm:$0xff] %vm211, %v220
          %223 = vrot.lane.b32.xlu0 %v210, 32
          %v224 = vpop.permute.xlu0 %223
          %s226 = scalar_lea.vmem [#allocation3], 8
          %227 = vst.msk [vmem:[%s226] sm:$0xff] %vm211, %v224
        $region40: #{policy_rollout.1} parent=31 // pred_fallthru
          _
        %v228 = vld [vmem:[#allocation4 + $0x100] sm:$0xf]
        %v229 = vunpack.c.l.bf16 %v228
        %v230 = vld [vmem:[%s201] sm:$0xff]
        %v231 = vld [vmem:[#allocation2] sm:$0xff]
        %v232 = vld [vmem:[#allocation3] sm:$0xff]
        %v233 = vld [vmem:[#allocation4] sm:$0xf]
        %v234 = vld [vmem:[#allocation4 + $0x4] sm:$0xf]
        %v235 = vld [vmem:[#allocation4 + $0x8] sm:$0xf]
        %v236 = vld [vmem:[#allocation4 + $0xc] sm:$0xf]
        %v237 = vld [vmem:[#allocation4 + $0x10] sm:$0xf]
        %v238 = vld [vmem:[#allocation4 + $0x14] sm:$0xf]
        %v239 = vld [vmem:[#allocation4 + $0x18] sm:$0xf]
        %v240 = vld [vmem:[#allocation4 + $0x1c] sm:$0xf]
        %v241 = vld [vmem:[#allocation4 + $0x20] sm:$0xf]
        %v242 = vld [vmem:[#allocation4 + $0x24] sm:$0xf]
        %v243 = vld [vmem:[#allocation4 + $0x28] sm:$0xf]
        %v244 = vld [vmem:[#allocation4 + $0x2c] sm:$0xf]
        %v245 = vld [vmem:[#allocation4 + $0x30] sm:$0xf]
        %v246 = vld [vmem:[#allocation4 + $0x34] sm:$0xf]
        %v247 = vld [vmem:[#allocation4 + $0x38] sm:$0xf]
        %v248 = vld [vmem:[#allocation4 + $0x3c] sm:$0xf]
        %v249 = vunpack.c.l.bf16 %v233
        %v250 = vunpack.c.l.bf16 %v234
        %v251 = vunpack.c.l.bf16 %v235
        %v252 = vunpack.c.l.bf16 %v236
        %v253 = vunpack.c.l.bf16 %v237
        %v254 = vunpack.c.l.bf16 %v238
        %v255 = vunpack.c.l.bf16 %v239
        %v256 = vunpack.c.l.bf16 %v240
        %v257 = vunpack.c.l.bf16 %v241
        %v258 = vunpack.c.l.bf16 %v242
        %v259 = vunpack.c.l.bf16 %v243
        %v260 = vunpack.c.l.bf16 %v244
        %v261 = vunpack.c.l.bf16 %v245
        %v262 = vunpack.c.l.bf16 %v246
        %v263 = vunpack.c.l.bf16 %v247
        %v264 = vunpack.c.l.bf16 %v248
        %v265 = vld [vmem:[#allocation4 + $0x40] sm:$0xf]
        %v266 = vld [vmem:[#allocation4 + $0x44] sm:$0xf]
        %v267 = vld [vmem:[#allocation4 + $0x48] sm:$0xf]
        %v268 = vld [vmem:[#allocation4 + $0x4c] sm:$0xf]
        %v269 = vunpack.c.l.bf16 %v265
        %v270 = vunpack.c.l.bf16 %v266
        %v271 = vunpack.c.l.bf16 %v267
        %v272 = vunpack.c.l.bf16 %v268
        %vm273 = vcmask 261120
        %v275 = vsel %vm273, %v231, 0
        %277 = vmatprep.subr.mxu0 0.0
        %278 = vmatpush1.msra.mxu0 %v269
        %279 = vmatprep.subr.mxu0 0.0
        %280 = vmatpush1.msra.mxu0 %v270
        %281 = vmatprep.subr.mxu0 0.0
        %282 = vmatpush1.msra.mxu0 %v271
        %283 = vmatprep.subr.mxu0 0.0
        %284 = vmatpush1.msra.mxu0 %v272
        %285 = vmatprep.subr.mxu0 0.0
        %286 = vmatpush1.msra.mxu0 0.0
        %287 = vmatprep.subr.mxu0 0.0
        %288 = vmatpush1.msra.mxu0 0.0
        %289 = vmatprep.subr.mxu0 0.0
        %290 = vmatpush1.msra.mxu0 0.0
        %291 = vmatprep.subr.mxu0 0.0
        %292 = vmatpush1.msra.mxu0 0.0
        %293 = vmatprep.subr.mxu0 0.0
        %294 = vmatpush1.msra.mxu0 0.0
        %295 = vmatprep.subr.mxu0 0.0
        %296 = vmatpush1.msra.mxu0 0.0
        %297 = vmatprep.subr.mxu0 0.0
        %298 = vmatpush1.msra.mxu0 0.0
        %299 = vmatprep.subr.mxu0 0.0
        %300 = vmatpush1.msra.mxu0 0.0
        %301 = vmatprep.subr.mxu0 0.0
        %302 = vmatpush1.msra.mxu0 0.0
        %303 = vmatprep.subr.mxu0 0.0
        %304 = vmatpush1.msra.mxu0 0.0
        %305 = vmatprep.subr.mxu0 0.0
        %306 = vmatpush1.msra.mxu0 0.0
        %307 = vmatprep.subr.mxu0 0.0
        %308 = vmatpush1.msra.mxu0 0.0
        %309 = vmatprep.subr.mxu0 0.0
        %310 = vmatpush1.msra.mxu0 0.0
        %311 = vmatprep.subr.mxu0 0.0
        %312 = vmatpush1.msra.mxu0 0.0
        %313 = vmatprep.subr.mxu0 0.0
        %314 = vmatpush1.msra.mxu0 0.0
        %315 = vmatprep.subr.mxu0 0.0
        %316 = vmatpush1.msra.mxu0 0.0
        %317 = vmatprep.subr.mxu0 0.0
        %318 = vmatpush1.msra.mxu0 0.0
        %319 = vmatprep.subr.mxu0 0.0
        %320 = vmatpush1.msra.mxu0 0.0
        %321 = vmatprep.subr.mxu0 0.0
        %322 = vmatpush1.msra.mxu0 0.0
        %323 = vmatprep.subr.mxu0 0.0
        %324 = vmatpush1.msra.mxu0 0.0
        %325 = vmatprep.subr.mxu0 0.0
        %326 = vmatpush1.msra.mxu0 0.0
        %327 = vmatprep.subr.mxu0 0.0
        %328 = vmatpush1.msra.mxu0 0.0
        %329 = vmatprep.subr.mxu0 0.0
        %330 = vmatpush1.msra.mxu0 0.0
        %331 = vmatprep.subr.mxu0 0.0
        %332 = vmatpush1.msra.mxu0 0.0
        %333 = vmatprep.subr.mxu0 0.0
        %334 = vmatpush1.msra.mxu0 0.0
        %335 = vmatprep.subr.mxu0 0.0
        %336 = vmatpush1.msra.mxu0 0.0
        %337 = vmatprep.subr.mxu0 0.0
        %338 = vmatpush1.msra.mxu0 0.0
        %339 = vmatprep.subr.mxu0 0.0
        %340 = vmatpush1.msra.mxu0 0.0
        %341 = vmatprep.mubr.f32.mxu0 0.0
        %342 = vmatmul.mubr.f32.gmra.mrb[0].mxu0 %v275
        %v343 = vpop.f32.mrb[0].mxu0
        %v344 = vadd.f32 0.0, %v343
        %v345 = vpop.f32.mrb[0].mxu0
        %346 = vdwg.mxu0
        %347 = vmatprep.subr.mxu0 0.0
        %348 = vmatpush1.msra.mxu0 %v249
        %349 = vmatprep.subr.mxu0 0.0
        %350 = vmatpush1.msra.mxu0 %v250
        %351 = vmatprep.subr.mxu0 0.0
        %352 = vmatpush1.msra.mxu0 %v251
        %353 = vmatprep.subr.mxu0 0.0
        %354 = vmatpush1.msra.mxu0 %v252
        %355 = vmatprep.subr.mxu0 0.0
        %356 = vmatpush1.msra.mxu0 %v253
        %357 = vmatprep.subr.mxu0 0.0
        %358 = vmatpush1.msra.mxu0 %v254
        %359 = vmatprep.subr.mxu0 0.0
        %360 = vmatpush1.msra.mxu0 %v255
        %361 = vmatprep.subr.mxu0 0.0
        %362 = vmatpush1.msra.mxu0 %v256
        %363 = vmatprep.subr.mxu0 0.0
        %364 = vmatpush1.msra.mxu0 %v257
        %365 = vmatprep.subr.mxu0 0.0
        %366 = vmatpush1.msra.mxu0 %v258
        %367 = vmatprep.subr.mxu0 0.0
        %368 = vmatpush1.msra.mxu0 %v259
        %369 = vmatprep.subr.mxu0 0.0
        %370 = vmatpush1.msra.mxu0 %v260
        %371 = vmatprep.subr.mxu0 0.0
        %372 = vmatpush1.msra.mxu0 %v261
        %373 = vmatprep.subr.mxu0 0.0
        %374 = vmatpush1.msra.mxu0 %v262
        %375 = vmatprep.subr.mxu0 0.0
        %376 = vmatpush1.msra.mxu0 %v263
        %377 = vmatprep.subr.mxu0 0.0
        %378 = vmatpush1.msra.mxu0 %v264
        %379 = vmatprep.subr.mxu0 0.0
        %380 = vmatpush1.msra.mxu0 0.0
        %381 = vmatprep.subr.mxu0 0.0
        %382 = vmatpush1.msra.mxu0 0.0
        %383 = vmatprep.subr.mxu0 0.0
        %384 = vmatpush1.msra.mxu0 0.0
        %385 = vmatprep.subr.mxu0 0.0
        %386 = vmatpush1.msra.mxu0 0.0
        %387 = vmatprep.subr.mxu0 0.0
        %388 = vmatpush1.msra.mxu0 0.0
        %389 = vmatprep.subr.mxu0 0.0
        %390 = vmatpush1.msra.mxu0 0.0
        %391 = vmatprep.subr.mxu0 0.0
        %392 = vmatpush1.msra.mxu0 0.0
        %393 = vmatprep.subr.mxu0 0.0
        %394 = vmatpush1.msra.mxu0 0.0
        %395 = vmatprep.subr.mxu0 0.0
        %396 = vmatpush1.msra.mxu0 0.0
        %397 = vmatprep.subr.mxu0 0.0
        %398 = vmatpush1.msra.mxu0 0.0
        %399 = vmatprep.subr.mxu0 0.0
        %400 = vmatpush1.msra.mxu0 0.0
        %401 = vmatprep.subr.mxu0 0.0
        %402 = vmatpush1.msra.mxu0 0.0
        %403 = vmatprep.subr.mxu0 0.0
        %404 = vmatpush1.msra.mxu0 0.0
        %405 = vmatprep.subr.mxu0 0.0
        %406 = vmatpush1.msra.mxu0 0.0
        %407 = vmatprep.subr.mxu0 0.0
        %408 = vmatpush1.msra.mxu0 0.0
        %409 = vmatprep.subr.mxu0 0.0
        %410 = vmatpush1.msra.mxu0 0.0
        %411 = vmatprep.mubr.f32.mxu0 0.0
        %412 = vmatmul.mubr.f32.gmra.mrb[0].mxu0 %v230
        %v413 = vpop.f32.mrb[0].mxu0
        %v414 = vadd.f32 %v344, %v413
        %v415 = vpop.f32.mrb[0].mxu0
        %416 = vdwg.mxu0
        %v417 = vlaneseq
        %v418 = vshrl.u32 %v417, 7
        %v419 = vsub.s32 0, %v418
        %v420 = vrot.slane %v229, %v419
        %v421 = vadd.f32 %v414, %v420
        %v422 = vsub.f32 0.0, %v421
        %v423 = vmul.f32 %v422, 1.442695
        %v424 = vpow.pop %v423
        %v425 = vadd.f32 %v424, 1.0
        %v426 = vrcp.pop %v425
        %v427 = vmul.f32 1.0, %v426
        %v428 = vmul.f32 %v427, 2.0
        %v429 = vsub.f32 %v428, 1.0
        %431 = vrot.lane.b32.xlu0 %v232, 32
        %v432 = vpop.permute.xlu0 %431
        %v434 = vmul.f32 %v427, %v432
        %436 = vrot.lane.b32.xlu0 %v429, 64
        %v437 = vpop.permute.xlu0 %436
        %v439 = vmul.f32 %v427, %v437
        %441 = vrot.lane.b32.xlu0 %v439, 32
        %v442 = vpop.permute.xlu0 %441
        %v444 = vadd.f32 %v434, %v442
        %v445 = vtanh.pop %v444
        %447 = vrot.lane.b32.xlu0 %v445, 64
        %v448 = vpop.permute.xlu0 %447
        %v450 = vmul.f32 %v427, %v448
        %s451 = scalar_lea.vmem [#allocation2], 8
        %v452 = vld [vmem:[%s451] sm:$0xff]
        %s453 = scalar_lea.vmem [#allocation3], 8
        %v454 = vld [vmem:[%s453] sm:$0xff]
        %v455 = vld [vmem:[#allocation4 + $0x50] sm:$0xf]
        %v456 = vld [vmem:[#allocation4 + $0x54] sm:$0xf]
        %v457 = vld [vmem:[#allocation4 + $0x58] sm:$0xf]
        %v458 = vld [vmem:[#allocation4 + $0x5c] sm:$0xf]
        %v459 = vunpack.c.l.bf16 %v455
        %v460 = vunpack.c.l.bf16 %v456
        %v461 = vunpack.c.l.bf16 %v457
        %v462 = vunpack.c.l.bf16 %v458
        %v463 = vld [vmem:[#allocation4 + $0x60] sm:$0xf]
        %v464 = vld [vmem:[#allocation4 + $0x64] sm:$0xf]
        %v465 = vld [vmem:[#allocation4 + $0x68] sm:$0xf]
        %v466 = vld [vmem:[#allocation4 + $0x6c] sm:$0xf]
        %v467 = vunpack.c.l.bf16 %v463
        %v468 = vunpack.c.l.bf16 %v464
        %v469 = vunpack.c.l.bf16 %v465
        %v470 = vunpack.c.l.bf16 %v466
        %v472 = vsel %vm273, %v452, 0
        %474 = vmatprep.subr.mxu0 0.0
        %475 = vmatpush1.msra.mxu0 %v467
        %476 = vmatprep.subr.mxu0 0.0
        %477 = vmatpush1.msra.mxu0 %v468
        %478 = vmatprep.subr.mxu0 0.0
        %479 = vmatpush1.msra.mxu0 %v469
        %480 = vmatprep.subr.mxu0 0.0
        %481 = vmatpush1.msra.mxu0 %v470
        %482 = vmatprep.subr.mxu0 0.0
        %483 = vmatpush1.msra.mxu0 0.0
        %484 = vmatprep.subr.mxu0 0.0
        %485 = vmatpush1.msra.mxu0 0.0
        %486 = vmatprep.subr.mxu0 0.0
        %487 = vmatpush1.msra.mxu0 0.0
        %488 = vmatprep.subr.mxu0 0.0
        %489 = vmatpush1.msra.mxu0 0.0
        %490 = vmatprep.subr.mxu0 0.0
        %491 = vmatpush1.msra.mxu0 0.0
        %492 = vmatprep.subr.mxu0 0.0
        %493 = vmatpush1.msra.mxu0 0.0
        %494 = vmatprep.subr.mxu0 0.0
        %495 = vmatpush1.msra.mxu0 0.0
        %496 = vmatprep.subr.mxu0 0.0
        %497 = vmatpush1.msra.mxu0 0.0
        %498 = vmatprep.subr.mxu0 0.0
        %499 = vmatpush1.msra.mxu0 0.0
        %500 = vmatprep.subr.mxu0 0.0
        %501 = vmatpush1.msra.mxu0 0.0
        %502 = vmatprep.subr.mxu0 0.0
        %503 = vmatpush1.msra.mxu0 0.0
        %504 = vmatprep.subr.mxu0 0.0
        %505 = vmatpush1.msra.mxu0 0.0
        %506 = vmatprep.subr.mxu0 0.0
        %507 = vmatpush1.msra.mxu0 0.0
        %508 = vmatprep.subr.mxu0 0.0
        %509 = vmatpush1.msra.mxu0 0.0
        %510 = vmatprep.subr.mxu0 0.0
        %511 = vmatpush1.msra.mxu0 0.0
        %512 = vmatprep.subr.mxu0 0.0
        %513 = vmatpush1.msra.mxu0 0.0
        %514 = vmatprep.subr.mxu0 0.0
        %515 = vmatpush1.msra.mxu0 0.0
        %516 = vmatprep.subr.mxu0 0.0
        %517 = vmatpush1.msra.mxu0 0.0
        %518 = vmatprep.subr.mxu0 0.0
        %519 = vmatpush1.msra.mxu0 0.0
        %520 = vmatprep.subr.mxu0 0.0
        %521 = vmatpush1.msra.mxu0 0.0
        %522 = vmatprep.subr.mxu0 0.0
        %523 = vmatpush1.msra.mxu0 0.0
        %524 = vmatprep.subr.mxu0 0.0
        %525 = vmatpush1.msra.mxu0 0.0
        %526 = vmatprep.subr.mxu0 0.0
        %527 = vmatpush1.msra.mxu0 0.0
        %528 = vmatprep.subr.mxu0 0.0
        %529 = vmatpush1.msra.mxu0 0.0
        %530 = vmatprep.subr.mxu0 0.0
        %531 = vmatpush1.msra.mxu0 0.0
        %532 = vmatprep.subr.mxu0 0.0
        %533 = vmatpush1.msra.mxu0 0.0
        %534 = vmatprep.subr.mxu0 0.0
        %535 = vmatpush1.msra.mxu0 0.0
        %536 = vmatprep.subr.mxu0 0.0
        %537 = vmatpush1.msra.mxu0 0.0
        %538 = vmatprep.mubr.f32.mxu0 0.0
        %539 = vmatmul.mubr.f32.gmra.mrb[0].mxu0 %v472
        %v540 = vpop.f32.mrb[0].mxu0
        %v541 = vadd.f32 0.0, %v540
        %v542 = vpop.f32.mrb[0].mxu0
        %543 = vdwg.mxu0
        %545 = vrot.lane.b32.xlu0 %v450, 32
        %v546 = vpop.permute.xlu0 %545
        %v547 = vsel %vm273, %v546, 0
        %549 = vmatprep.subr.mxu0 0.0
        %550 = vmatpush1.msra.mxu0 %v459
        %551 = vmatprep.subr.mxu0 0.0
        %552 = vmatpush1.msra.mxu0 %v460
        %553 = vmatprep.subr.mxu0 0.0
        %554 = vmatpush1.msra.mxu0 %v461
        %555 = vmatprep.subr.mxu0 0.0
        %556 = vmatpush1.msra.mxu0 %v462
        %557 = vmatprep.subr.mxu0 0.0
        %558 = vmatpush1.msra.mxu0 0.0
        %559 = vmatprep.subr.mxu0 0.0
        %560 = vmatpush1.msra.mxu0 0.0
        %561 = vmatprep.subr.mxu0 0.0
        %562 = vmatpush1.msra.mxu0 0.0
        %563 = vmatprep.subr.mxu0 0.0
        %564 = vmatpush1.msra.mxu0 0.0
        %565 = vmatprep.subr.mxu0 0.0
        %566 = vmatpush1.msra.mxu0 0.0
        %567 = vmatprep.subr.mxu0 0.0
        %568 = vmatpush1.msra.mxu0 0.0
        %569 = vmatprep.subr.mxu0 0.0
        %570 = vmatpush1.msra.mxu0 0.0
        %571 = vmatprep.subr.mxu0 0.0
        %572 = vmatpush1.msra.mxu0 0.0
        %573 = vmatprep.subr.mxu0 0.0
        %574 = vmatpush1.msra.mxu0 0.0
        %575 = vmatprep.subr.mxu0 0.0
        %576 = vmatpush1.msra.mxu0 0.0
        %577 = vmatprep.subr.mxu0 0.0
        %578 = vmatpush1.msra.mxu0 0.0
        %579 = vmatprep.subr.mxu0 0.0
        %580 = vmatpush1.msra.mxu0 0.0
        %581 = vmatprep.subr.mxu0 0.0
        %582 = vmatpush1.msra.mxu0 0.0
        %583 = vmatprep.subr.mxu0 0.0
        %584 = vmatpush1.msra.mxu0 0.0
        %585 = vmatprep.subr.mxu0 0.0
        %586 = vmatpush1.msra.mxu0 0.0
        %587 = vmatprep.subr.mxu0 0.0
        %588 = vmatpush1.msra.mxu0 0.0
        %589 = vmatprep.subr.mxu0 0.0
        %590 = vmatpush1.msra.mxu0 0.0
        %591 = vmatprep.subr.mxu0 0.0
        %592 = vmatpush1.msra.mxu0 0.0
        %593 = vmatprep.subr.mxu0 0.0
        %594 = vmatpush1.msra.mxu0 0.0
        %595 = vmatprep.subr.mxu0 0.0
        %596 = vmatpush1.msra.mxu0 0.0
        %597 = vmatprep.subr.mxu0 0.0
        %598 = vmatpush1.msra.mxu0 0.0
        %599 = vmatprep.subr.mxu0 0.0
        %600 = vmatpush1.msra.mxu0 0.0
        %601 = vmatprep.subr.mxu0 0.0
        %602 = vmatpush1.msra.mxu0 0.0
        %603 = vmatprep.subr.mxu0 0.0
        %604 = vmatpush1.msra.mxu0 0.0
        %605 = vmatprep.subr.mxu0 0.0
        %606 = vmatpush1.msra.mxu0 0.0
        %607 = vmatprep.subr.mxu0 0.0
        %608 = vmatpush1.msra.mxu0 0.0
        %609 = vmatprep.subr.mxu0 0.0
        %610 = vmatpush1.msra.mxu0 0.0
        %611 = vmatprep.subr.mxu0 0.0
        %612 = vmatpush1.msra.mxu0 0.0
        %613 = vmatprep.mubr.f32.mxu0 0.0
        %614 = vmatmul.mubr.f32.gmra.mrb[0].mxu0 %v547
        %v615 = vpop.f32.mrb[0].mxu0
        %v616 = vadd.f32 %v541, %v615
        %v617 = vpop.f32.mrb[0].mxu0
        %618 = vdwg.mxu0
        %v619 = vlaneseq
        %v620 = vshrl.u32 %v619, 7
        %v621 = vsub.s32 1, %v620
        %v622 = vrot.slane %v229, %v621
        %v623 = vadd.f32 %v616, %v622
        %v624 = vsub.f32 0.0, %v623
        %v625 = vmul.f32 %v624, 1.442695
        %v626 = vpow.pop %v625
        %v627 = vadd.f32 %v626, 1.0
        %v628 = vrcp.pop %v627
        %v629 = vmul.f32 1.0, %v628
        %v630 = vmul.f32 %v629, 2.0
        %v631 = vsub.f32 %v630, 1.0
        %633 = vrot.lane.b32.xlu0 %v454, 32
        %v634 = vpop.permute.xlu0 %633
        %v636 = vmul.f32 %v629, %v634
        %638 = vrot.lane.b32.xlu0 %v631, 64
        %v639 = vpop.permute.xlu0 %638
        %v641 = vmul.f32 %v629, %v639
        %643 = vrot.lane.b32.xlu0 %v641, 32
        %v644 = vpop.permute.xlu0 %643
        %v646 = vadd.f32 %v636, %v644
        %v647 = vtanh.pop %v646
        %649 = vrot.lane.b32.xlu0 %v647, 64
        %v650 = vpop.permute.xlu0 %649
        %v652 = vmul.f32 %v629, %v650
        %654 = vst.msk [vmem:[#allocation2] sm:$0xff] %vm273, %v546
        %656 = vrot.lane.b32.xlu0 %v444, 96
        %v657 = vpop.permute.xlu0 %656
        %659 = vst.msk [vmem:[#allocation3] sm:$0xff] %vm273, %v657
        %661 = vrot.lane.b32.xlu0 %v652, 32
        %v662 = vpop.permute.xlu0 %661
        %664 = vst.msk [vmem:[%s451] sm:$0xff] %vm273, %v662
        %666 = vrot.lane.b32.xlu0 %v646, 96
        %v667 = vpop.permute.xlu0 %666
        %669 = vst.msk [vmem:[%s453] sm:$0xff] %vm273, %v667
        %v670 = vld [vmem:[#allocation4 + $0x70] sm:$0xf]
        %v671 = vld [vmem:[#allocation4 + $0x74] sm:$0xf]
        %v672 = vld [vmem:[#allocation4 + $0x78] sm:$0xf]
        %v673 = vld [vmem:[#allocation4 + $0x7c] sm:$0xf]
        %v674 = vunpack.c.l.bf16 %v670
        %v675 = vunpack.c.l.bf16 %v671
        %v676 = vunpack.c.l.bf16 %v672
        %v677 = vunpack.c.l.bf16 %v673
        %v678 = vlaneseq
        %v679 = vshrl.u32 %v678, 7
        %v680 = vsub.s32 2, %v679
        %v681 = vrot.slane %v229, %v680
        %v682 = vsel %vm273, %v662, 0
        %684 = vmatprep.subr.mxu0 0.0
        %685 = vmatpush1.msra.mxu0 %v674
        %686 = vmatprep.subr.mxu0 0.0
        %687 = vmatpush1.msra.mxu0 %v675
        %688 = vmatprep.subr.mxu0 0.0
        %689 = vmatpush1.msra.mxu0 %v676
        %690 = vmatprep.subr.mxu0 0.0
        %691 = vmatpush1.msra.mxu0 %v677
        %692 = vmatprep.subr.mxu0 0.0
        %693 = vmatpush1.msra.mxu0 0.0
        %694 = vmatprep.subr.mxu0 0.0
        %695 = vmatpush1.msra.mxu0 0.0
        %696 = vmatprep.subr.mxu0 0.0
        %697 = vmatpush1.msra.mxu0 0.0
        %698 = vmatprep.subr.mxu0 0.0
        %699 = vmatpush1.msra.mxu0 0.0
        %700 = vmatprep.subr.mxu0 0.0
        %701 = vmatpush1.msra.mxu0 0.0
        %702 = vmatprep.subr.mxu0 0.0
        %703 = vmatpush1.msra.mxu0 0.0
        %704 = vmatprep.subr.mxu0 0.0
        %705 = vmatpush1.msra.mxu0 0.0
        %706 = vmatprep.subr.mxu0 0.0
        %707 = vmatpush1.msra.mxu0 0.0
        %708 = vmatprep.subr.mxu0 0.0
        %709 = vmatpush1.msra.mxu0 0.0
        %710 = vmatprep.subr.mxu0 0.0
        %711 = vmatpush1.msra.mxu0 0.0
        %712 = vmatprep.subr.mxu0 0.0
        %713 = vmatpush1.msra.mxu0 0.0
        %714 = vmatprep.subr.mxu0 0.0
        %715 = vmatpush1.msra.mxu0 0.0
        %716 = vmatprep.subr.mxu0 0.0
        %717 = vmatpush1.msra.mxu0 0.0
        %718 = vmatprep.subr.mxu0 0.0
        %719 = vmatpush1.msra.mxu0 0.0
        %720 = vmatprep.subr.mxu0 0.0
        %721 = vmatpush1.msra.mxu0 0.0
        %722 = vmatprep.subr.mxu0 0.0
        %723 = vmatpush1.msra.mxu0 0.0
        %724 = vmatprep.subr.mxu0 0.0
        %725 = vmatpush1.msra.mxu0 0.0
        %726 = vmatprep.subr.mxu0 0.0
        %727 = vmatpush1.msra.mxu0 0.0
        %728 = vmatprep.subr.mxu0 0.0
        %729 = vmatpush1.msra.mxu0 0.0
        %730 = vmatprep.subr.mxu0 0.0
        %731 = vmatpush1.msra.mxu0 0.0
        %732 = vmatprep.subr.mxu0 0.0
        %733 = vmatpush1.msra.mxu0 0.0
        %734 = vmatprep.subr.mxu0 0.0
        %735 = vmatpush1.msra.mxu0 0.0
        %736 = vmatprep.subr.mxu0 0.0
        %737 = vmatpush1.msra.mxu0 0.0
        %738 = vmatprep.subr.mxu0 0.0
        %739 = vmatpush1.msra.mxu0 0.0
        %740 = vmatprep.subr.mxu0 0.0
        %741 = vmatpush1.msra.mxu0 0.0
        %742 = vmatprep.subr.mxu0 0.0
        %743 = vmatpush1.msra.mxu0 0.0
        %744 = vmatprep.subr.mxu0 0.0
        %745 = vmatpush1.msra.mxu0 0.0
        %746 = vmatprep.subr.mxu0 0.0
        %747 = vmatpush1.msra.mxu0 0.0
        %748 = vmatprep.mubr.f32.mxu0 0.0
        %749 = vmatmul.mubr.f32.gmra.mrb[0].mxu0 %v682
        %v750 = vpop.f32.mrb[0].mxu0
        %v751 = vadd.f32 %v681, %v750
        %v752 = vpop.f32.mrb[0].mxu0
        %753 = vdwg.mxu0
        %vm754 = vcmp.gt.f32.partialorder %v751, 0.0
        %v755 = vmin.f32 %v751, 0.0
        %v756 = vmul.f32 %v755, 1.442695
        %v757 = vpow.pop %v756
        %v758 = vsub.f32 %v757, 1.0
        %v759 = vsel %vm754, %v751, %v758
        %v760 = vld [vmem:[#allocation4 + $0x80] sm:$0xf]
        %v761 = vld [vmem:[#allocation4 + $0x84] sm:$0xf]
        %v762 = vld [vmem:[#allocation4 + $0x88] sm:$0xf]
        %v763 = vld [vmem:[#allocation4 + $0x8c] sm:$0xf]
        %v764 = vld [vmem:[#allocation4 + $0x90] sm:$0xf]
        %v765 = vld [vmem:[#allocation4 + $0x94] sm:$0xf]
        %v766 = vld [vmem:[#allocation4 + $0x98] sm:$0xf]
        %v767 = vld [vmem:[#allocation4 + $0x9c] sm:$0xf]
        %v768 = vld [vmem:[#allocation4 + $0xa0] sm:$0xf]
        %v769 = vld [vmem:[#allocation4 + $0xa4] sm:$0xf]
        %v770 = vld [vmem:[#allocation4 + $0xa8] sm:$0xf]
        %v771 = vld [vmem:[#allocation4 + $0xac] sm:$0xf]
        %v772 = vld [vmem:[#allocation4 + $0xb0] sm:$0xf]
        %v773 = vld [vmem:[#allocation4 + $0xb4] sm:$0xf]
        %v774 = vld [vmem:[#allocation4 + $0xb8] sm:$0xf]
        %v775 = vld [vmem:[#allocation4 + $0xbc] sm:$0xf]
        %v776 = vunpack.c.l.bf16 %v760
        %v777 = vunpack.c.l.bf16 %v761
        %v778 = vunpack.c.l.bf16 %v762
        %v779 = vunpack.c.l.bf16 %v763
        %v780 = vunpack.c.l.bf16 %v764
        %v781 = vunpack.c.l.bf16 %v765
        %v782 = vunpack.c.l.bf16 %v766
        %v783 = vunpack.c.l.bf16 %v767
        %v784 = vunpack.c.l.bf16 %v768
        %v785 = vunpack.c.l.bf16 %v769
        %v786 = vunpack.c.l.bf16 %v770
        %v787 = vunpack.c.l.bf16 %v771
        %v788 = vunpack.c.l.bf16 %v772
        %v789 = vunpack.c.l.bf16 %v773
        %v790 = vunpack.c.l.bf16 %v774
        %v791 = vunpack.c.l.bf16 %v775
        %v792 = vlaneseq
        %v793 = vshrl.u32 %v792, 7
        %v794 = vsub.s32 3, %v793
        %v795 = vrot.slane %v229, %v794
        %796 = vmatprep.subr.mxu0 0.0
        %797 = vmatpush1.msra.mxu0 %v776
        %798 = vmatprep.subr.mxu0 0.0
        %799 = vmatpush1.msra.mxu0 %v777
        %800 = vmatprep.subr.mxu0 0.0
        %801 = vmatpush1.msra.mxu0 %v778
        %802 = vmatprep.subr.mxu0 0.0
        %803 = vmatpush1.msra.mxu0 %v779
        %804 = vmatprep.subr.mxu0 0.0
        %805 = vmatpush1.msra.mxu0 %v780
        %806 = vmatprep.subr.mxu0 0.0
        %807 = vmatpush1.msra.mxu0 %v781
        %808 = vmatprep.subr.mxu0 0.0
        %809 = vmatpush1.msra.mxu0 %v782
        %810 = vmatprep.subr.mxu0 0.0
        %811 = vmatpush1.msra.mxu0 %v783
        %812 = vmatprep.subr.mxu0 0.0
        %813 = vmatpush1.msra.mxu0 %v784
        %814 = vmatprep.subr.mxu0 0.0
        %815 = vmatpush1.msra.mxu0 %v785
        %816 = vmatprep.subr.mxu0 0.0
        %817 = vmatpush1.msra.mxu0 %v786
        %818 = vmatprep.subr.mxu0 0.0
        %819 = vmatpush1.msra.mxu0 %v787
        %820 = vmatprep.subr.mxu0 0.0
        %821 = vmatpush1.msra.mxu0 %v788
        %822 = vmatprep.subr.mxu0 0.0
        %823 = vmatpush1.msra.mxu0 %v789
        %824 = vmatprep.subr.mxu0 0.0
        %825 = vmatpush1.msra.mxu0 %v790
        %826 = vmatprep.subr.mxu0 0.0
        %827 = vmatpush1.msra.mxu0 %v791
        %828 = vmatprep.subr.mxu0 0.0
        %829 = vmatpush1.msra.mxu0 0.0
        %830 = vmatprep.subr.mxu0 0.0
        %831 = vmatpush1.msra.mxu0 0.0
        %832 = vmatprep.subr.mxu0 0.0
        %833 = vmatpush1.msra.mxu0 0.0
        %834 = vmatprep.subr.mxu0 0.0
        %835 = vmatpush1.msra.mxu0 0.0
        %836 = vmatprep.subr.mxu0 0.0
        %837 = vmatpush1.msra.mxu0 0.0
        %838 = vmatprep.subr.mxu0 0.0
        %839 = vmatpush1.msra.mxu0 0.0
        %840 = vmatprep.subr.mxu0 0.0
        %841 = vmatpush1.msra.mxu0 0.0
        %842 = vmatprep.subr.mxu0 0.0
        %843 = vmatpush1.msra.mxu0 0.0
        %844 = vmatprep.subr.mxu0 0.0
        %845 = vmatpush1.msra.mxu0 0.0
        %846 = vmatprep.subr.mxu0 0.0
        %847 = vmatpush1.msra.mxu0 0.0
        %848 = vmatprep.subr.mxu0 0.0
        %849 = vmatpush1.msra.mxu0 0.0
        %850 = vmatprep.subr.mxu0 0.0
        %851 = vmatpush1.msra.mxu0 0.0
        %852 = vmatprep.subr.mxu0 0.0
        %853 = vmatpush1.msra.mxu0 0.0
        %854 = vmatprep.subr.mxu0 0.0
        %855 = vmatpush1.msra.mxu0 0.0
        %856 = vmatprep.subr.mxu0 0.0
        %857 = vmatpush1.msra.mxu0 0.0
        %858 = vmatprep.subr.mxu0 0.0
        %859 = vmatpush1.msra.mxu0 0.0
        %860 = vmatprep.mubr.f32.mxu0 0.0
        %861 = vmatmul.mubr.f32.gmra.mrb[0].mxu0 %v759
        %v862 = vpop.f32.mrb[0].mxu0
        %v863 = vadd.f32 %v795, %v862
        %v864 = vpop.f32.mrb[0].mxu0
        %865 = vdwg.mxu0
        %vm866 = vcmp.gt.f32.partialorder %v863, 0.0
        %v867 = vmin.f32 %v863, 0.0
        %v868 = vmul.f32 %v867, 1.442695
        %v869 = vpow.pop %v868
        %v870 = vsub.f32 %v869, 1.0
        %v871 = vsel %vm866, %v863, %v870
        %v872 = vld [vmem:[#allocation4 + $0xc0] sm:$0xf]
        %v873 = vld [vmem:[#allocation4 + $0xc4] sm:$0xf]
        %v874 = vld [vmem:[#allocation4 + $0xc8] sm:$0xf]
        %v875 = vld [vmem:[#allocation4 + $0xcc] sm:$0xf]
        %v876 = vld [vmem:[#allocation4 + $0xd0] sm:$0xf]
        %v877 = vld [vmem:[#allocation4 + $0xd4] sm:$0xf]
        %v878 = vld [vmem:[#allocation4 + $0xd8] sm:$0xf]
        %v879 = vld [vmem:[#allocation4 + $0xdc] sm:$0xf]
        %v880 = vld [vmem:[#allocation4 + $0xe0] sm:$0xf]
        %v881 = vld [vmem:[#allocation4 + $0xe4] sm:$0xf]
        %v882 = vld [vmem:[#allocation4 + $0xe8] sm:$0xf]
        %v883 = vld [vmem:[#allocation4 + $0xec] sm:$0xf]
        %v884 = vld [vmem:[#allocation4 + $0xf0] sm:$0xf]
        %v885 = vld [vmem:[#allocation4 + $0xf4] sm:$0xf]
        %v886 = vld [vmem:[#allocation4 + $0xf8] sm:$0xf]
        %v887 = vld [vmem:[#allocation4 + $0xfc] sm:$0xf]
        %v888 = vunpack.c.l.bf16 %v872
        %v889 = vunpack.c.l.bf16 %v873
        %v890 = vunpack.c.l.bf16 %v874
        %v891 = vunpack.c.l.bf16 %v875
        %v892 = vunpack.c.l.bf16 %v876
        %v893 = vunpack.c.l.bf16 %v877
        %v894 = vunpack.c.l.bf16 %v878
        %v895 = vunpack.c.l.bf16 %v879
        %v896 = vunpack.c.l.bf16 %v880
        %v897 = vunpack.c.l.bf16 %v881
        %v898 = vunpack.c.l.bf16 %v882
        %v899 = vunpack.c.l.bf16 %v883
        %v900 = vunpack.c.l.bf16 %v884
        %v901 = vunpack.c.l.bf16 %v885
        %v902 = vunpack.c.l.bf16 %v886
        %v903 = vunpack.c.l.bf16 %v887
        %v904 = vlaneseq
        %v905 = vshrl.u32 %v904, 7
        %v906 = vsub.s32 4, %v905
        %v907 = vrot.slane %v229, %v906
        %908 = vmatprep.subr.mxu0 0.0
        %909 = vmatpush1.msra.mxu0 %v888
        %910 = vmatprep.subr.mxu0 0.0
        %911 = vmatpush1.msra.mxu0 %v889
        %912 = vmatprep.subr.mxu0 0.0
        %913 = vmatpush1.msra.mxu0 %v890
        %914 = vmatprep.subr.mxu0 0.0
        %915 = vmatpush1.msra.mxu0 %v891
        %916 = vmatprep.subr.mxu0 0.0
        %917 = vmatpush1.msra.mxu0 %v892
        %918 = vmatprep.subr.mxu0 0.0
        %919 = vmatpush1.msra.mxu0 %v893
        %920 = vmatprep.subr.mxu0 0.0
        %921 = vmatpush1.msra.mxu0 %v894
        %922 = vmatprep.subr.mxu0 0.0
        %923 = vmatpush1.msra.mxu0 %v895
        %924 = vmatprep.subr.mxu0 0.0
        %925 = vmatpush1.msra.mxu0 %v896
        %926 = vmatprep.subr.mxu0 0.0
        %927 = vmatpush1.msra.mxu0 %v897
        %928 = vmatprep.subr.mxu0 0.0
        %929 = vmatpush1.msra.mxu0 %v898
        %930 = vmatprep.subr.mxu0 0.0
        %931 = vmatpush1.msra.mxu0 %v899
        %932 = vmatprep.subr.mxu0 0.0
        %933 = vmatpush1.msra.mxu0 %v900
        %934 = vmatprep.subr.mxu0 0.0
        %935 = vmatpush1.msra.mxu0 %v901
        %936 = vmatprep.subr.mxu0 0.0
        %937 = vmatpush1.msra.mxu0 %v902
        %938 = vmatprep.subr.mxu0 0.0
        %939 = vmatpush1.msra.mxu0 %v903
        %940 = vmatprep.subr.mxu0 0.0
        %941 = vmatpush1.msra.mxu0 0.0
        %942 = vmatprep.subr.mxu0 0.0
        %943 = vmatpush1.msra.mxu0 0.0
        %944 = vmatprep.subr.mxu0 0.0
        %945 = vmatpush1.msra.mxu0 0.0
        %946 = vmatprep.subr.mxu0 0.0
        %947 = vmatpush1.msra.mxu0 0.0
        %948 = vmatprep.subr.mxu0 0.0
        %949 = vmatpush1.msra.mxu0 0.0
        %950 = vmatprep.subr.mxu0 0.0
        %951 = vmatpush1.msra.mxu0 0.0
        %952 = vmatprep.subr.mxu0 0.0
        %953 = vmatpush1.msra.mxu0 0.0
        %954 = vmatprep.subr.mxu0 0.0
        %955 = vmatpush1.msra.mxu0 0.0
        %956 = vmatprep.subr.mxu0 0.0
        %957 = vmatpush1.msra.mxu0 0.0
        %958 = vmatprep.subr.mxu0 0.0
        %959 = vmatpush1.msra.mxu0 0.0
        %960 = vmatprep.subr.mxu0 0.0
        %961 = vmatpush1.msra.mxu0 0.0
        %962 = vmatprep.subr.mxu0 0.0
        %963 = vmatpush1.msra.mxu0 0.0
        %964 = vmatprep.subr.mxu0 0.0
        %965 = vmatpush1.msra.mxu0 0.0
        %966 = vmatprep.subr.mxu0 0.0
        %967 = vmatpush1.msra.mxu0 0.0
        %968 = vmatprep.subr.mxu0 0.0
        %969 = vmatpush1.msra.mxu0 0.0
        %970 = vmatprep.subr.mxu0 0.0
        %971 = vmatpush1.msra.mxu0 0.0
        %972 = vmatprep.mubr.f32.mxu0 0.0
        %973 = vmatmul.mubr.f32.gmra.mrb[0].mxu0 %v871
        %v974 = vpop.f32.mrb[0].mxu0
        %v975 = vadd.f32 %v907, %v974
        %v976 = vpop.f32.mrb[0].mxu0
        %977 = vdwg.mxu0
        %978 = vst [vmem:[%s205] sm:$0xff] %v975
        %p979 = scmp.eq.s32.totalorder %s17, 7
        // Predicated region
        $region41: #{policy_rollout.1} parent=31 // pred_check
          %p980 = pneg %p979
        $region42: #{policy_rollout.1} parent=31 // pred_check_branch
          %982 = sbr.rel (%p980) target = $region44
        $region43: #{policy_rollout.1} parent=31 // pred_region
          %983 = vst.msk [vmem:[%s4] sm:$0xff] %vm273, %v546
          %984 = vrot.lane.b32.xlu0 %v652, 64
          %v985 = vpop.permute.xlu0 %984
          %vm987 = vcmask 523520
          %988 = vst.msk [vmem:[%s4] sm:$0xff] %vm987, %v985
          %989 = vrot.lane.b32.xlu0 %v444, 32
          %v990 = vpop.permute.xlu0 %989
          %vm992 = vcmask 785920
          %993 = vst.msk [vmem:[%s4] sm:$0xff] %vm992, %v990
          %994 = vrot.lane.b32.xlu0 %v646, 64
          %v995 = vpop.permute.xlu0 %994
          %vm997 = vcmask 1048320
          %998 = vst.msk [vmem:[%s4] sm:$0xff] %vm997, %v995
        $region44: #{policy_rollout.1} parent=31 // pred_fallthru
          _
        %p999 = scmp.lt.s32.totalorder %s17, 7
        %s1000 = scalar_select %p999, %s17, 7
        %s1001 = smul.addr %s1000, 8
        %s1002 = scalar_lea.vmem %s3, %s1001
        // Predicated region
        $region45: #{policy_rollout.1} parent=31 // pred_check
          %p1003 = pneg %p103
        $region46: #{policy_rollout.1} parent=31 // pred_check_branch
          %1005 = sbr.rel (%p1003) target = $region48
        $region47: #{policy_rollout.1} parent=31 // pred_region
          _
        $region48: #{policy_rollout.1} parent=31 // pred_fallthru
          _
        // Predicated region
        $region49: #{policy_rollout.1} parent=31 // pred_check
          %p1006 = pneg %p124
        $region50: #{policy_rollout.1} parent=31 // pred_check_branch
          %1008 = sbr.rel (%p1006) target = $region52
        $region51: #{policy_rollout.1} parent=31 // pred_region
          _
        $region52: #{policy_rollout.1} parent=31 // pred_fallthru
          _
        // Predicated region
        $region53: #{policy_rollout.1} parent=31 // pred_check
          %p1009 = pneg %p124
        $region54: #{policy_rollout.1} parent=31 // pred_check_branch
          %1011 = sbr.rel (%p1009) target = $region56
        $region55: #{policy_rollout.1} parent=31 // pred_region
          _
        $region56: #{policy_rollout.1} parent=31 // pred_fallthru
          _
      $region32: #{policy_rollout.1} parent=5 // pred_fallthru
        _
      %p1012 = scmp.le.s32.totalorder 2, %s12
      // Predicated region
      $region57: #{policy_rollout.1} parent=5 // pred_check
        %p1013 = pneg %p1012
      $region58: #{policy_rollout.1} parent=5 // pred_check_branch
        %1015 = sbr.rel (%p1013) target = $region60
      $region59: #{policy_rollout.1} parent=5 // pred_region
        %s1016 = ssub.s32 %s12, 2
        // Predicated region
        $region61: #{policy_rollout.1} parent=59 // pred_check
          %p1017 = pneg %p109
        $region62: #{policy_rollout.1} parent=59 // pred_check_branch
          %1019 = sbr.rel (%p1017) target = $region64
        $region63: #{policy_rollout.1} parent=59 // pred_region
          %p1020 = scmp.lt.s32.totalorder %s18, 7
          %s1021 = scalar_select %p1020, %s18, 7
          %s1022 = smul.addr %s1021, 8
          %s1023 = scalar_lea.vmem %s3, %s1022
        $region64: #{policy_rollout.1} parent=59 // pred_fallthru
          _
      $region60: #{policy_rollout.1} parent=5 // pred_fallthru
        _
    $region6: #{policy_rollout.1} parent=1 // loop_footer
      %s16 = sadd.s32 1, %s12
    $region7: #{policy_rollout.1} parent=1 // loop_footer_branch
      %11 = sbr.rel target = $region3
    $region8: #{policy_rollout.1} parent=1 // loop_exit
      _
    %1024 = vsyncpa [#allocation5], 1
    %s1025 = scalar_lea.sflag [#allocation5], 1
    %1026 = vsyncpa %s1025, 1

</llo_original>
